<compile_context>
chip_gen: v7x
topology: tpu7x:2x2x1
jax: 0.10.0
libtpu: 0.0.40
codegen_flags: <defaults>
</compile_context>

<pallas_src>
import math
from functools import partial

import numpy as np
import jax
import jax.numpy as jnp
from jax import lax
from jax.experimental import pallas as pl
from jax.experimental.pallas import tpu as pltpu

MUL = 8                       # multiplicity of 0e and of 1o
DIM = MUL * 1 + MUL * 3       # 32 = e3nn irreps dimension of "8x0e + 8x1o"
GATE_DIM = 2 * MUL + 3 * MUL  # 40 = 8 scalars + 8 gates + 24 vector components

# --- e3nn normalization constants (irrep_normalization='component', path_normalization='element') ---
INV_SQRT_MUL = 1.0 / math.sqrt(MUL)          # o3.Linear path weight, single path, fan_in = MUL
INV_SQRT3 = 1.0 / math.sqrt(3.0)             # wigner_3j(1,1,0)/(0,1,1)/(1,0,1) = delta / sqrt(3)
FAN_TP = 2 * MUL * MUL                       # two 'uvw' paths feed each output irrep
C_TP_SCALAR = math.sqrt(1.0 / FAN_TP)        # sqrt(dim(0e)/fan)
C_TP_VECTOR = math.sqrt(3.0 / FAN_TP)        # sqrt(dim(1o)/fan)

# normalize2mom(tanh): 1 / sqrt(E[tanh(z)^2]), z ~ N(0,1), via Gauss-Hermite quadrature.
_h_nodes, _h_weights = np.polynomial.hermite.hermgauss(200)
_tanh_m2 = float((_h_weights * np.tanh(np.sqrt(2.0) * _h_nodes) ** 2).sum() / np.sqrt(np.pi))
TANH_CST = float(_tanh_m2 ** -0.5)
# TODO(synk): e3nn computes this constant from 1e6 torch.randn samples (seed 0); the quadrature
#             value is the exact second moment, differing from e3nn's MC estimate by ~1e-3.

# HIGHEST precision is used ONLY for one-time host-side weight folding and the reference;
# the kernel itself runs bf16-operand / f32-accumulate matmuls.
_PREC = lax.Precision.HIGHEST


# ----------------------------------------------------------------------------------------------
# Host-side weight preparation: fold layout (W ⊗ I3), Wigner deltas, the gate linear and all
# normalization constants into a handful of dense matrices so the kernel is pure matmuls +
# tanh + gating.
# ----------------------------------------------------------------------------------------------
def _expand_vec(w):
    """(8, 8) multiplicity mixing -> (24, 24) acting on the e3nn (mul, 3) flattened layout."""
    eye3 = jnp.eye(3, dtype=jnp.float32)
    return jnp.einsum("uw,ij->uiwj", w, eye3).reshape(3 * MUL, 3 * MUL)


def _block_diag(w_scalar, w_vector):
    """(8,8) scalar block + (8,8) vector block -> (32, 32) acting on the full e3nn layout."""
    top = jnp.concatenate([w_scalar, jnp.zeros((MUL, 3 * MUL), jnp.float32)], axis=1)
    bot = jnp.concatenate([jnp.zeros((3 * MUL, MUL), jnp.float32), _expand_vec(w_vector)], axis=1)
    return jnp.concatenate([top, bot], axis=0)


def _prepare_weights(w2d, wtp):
    eye3 = jnp.eye(3, dtype=jnp.float32)
    c = INV_SQRT_MUL

    # lin1 / lin2 with the o3.Linear normalization folded in.
    w1 = _block_diag(w2d[0], w2d[1]) * c                                       # (32, 32)
    w2 = _block_diag(w2d[2], w2d[3]) * c                                       # (32, 32)

    # Fused FullyConnectedTensorProduct weight W_TP[p, q, r] (e3nn layout on all axes).
    wtp_full = jnp.zeros((DIM, DIM, DIM), jnp.float32)
    wtp_full = wtp_full.at[:MUL, :MUL, :MUL].set(wtp[0] * C_TP_SCALAR)         # 0e x 0e -> 0e
    wtp_full = wtp_full.at[MUL:, MUL:, :MUL].set(                              # 1o x 1o -> 0e
        jnp.einsum("uvw,ij->uivjw", wtp[1], eye3).reshape(3 * MUL, 3 * MUL, MUL)
        * (INV_SQRT3 * C_TP_SCALAR))
    wtp_full = wtp_full.at[:MUL, MUL:, MUL:].set(                              # 0e x 1o -> 1o
        jnp.einsum("uvw,jk->uvjwk", wtp[2], eye3).reshape(MUL, 3 * MUL, 3 * MUL)
        * (INV_SQRT3 * C_TP_VECTOR))
    wtp_full = wtp_full.at[MUL:, :MUL, MUL:].set(                              # 1o x 0e -> 1o
        jnp.einsum("uvw,ik->uivwk", wtp[3], eye3).reshape(3 * MUL, MUL, 3 * MUL)
        * (INV_SQRT3 * C_TP_VECTOR))
    wtp_flat = wtp_full.reshape(DIM * DIM, DIM)                                # (1024, 32)

    # LearnableGate linear (32, 40): columns = [8 scalars | 8 gates | 24 vector components] ...
    wg = jnp.zeros((DIM, GATE_DIM), jnp.float32)
    wg = wg.at[:MUL, :MUL].set(w2d[4] * c)
    wg = wg.at[:MUL, MUL:2 * MUL].set(w2d[5] * c)
    wg = wg.at[MUL:, 2 * MUL:].set(_expand_vec(w2d[6]) * c)
    # ... folded into the TP weight: the kernel runs one (Tb,1024) @ (1024,40) matmul.
    wtpg = jnp.dot(wtp_flat, wg, precision=_PREC)                              # (1024, 40)

    # Gate replication 8 -> 24 as a constant 0/1 selection matrix acting on [scalars | gates].
    rs = jnp.zeros((2 * MUL, 3 * MUL), jnp.float32)
    rs = rs.at[MUL + jnp.repeat(jnp.arange(MUL), 3), jnp.arange(3 * MUL)].set(1.0)

    # lin_out with the normalize2mom(tanh) constant folded in (applies once to each branch).
    wout = _block_diag(w2d[7], w2d[8]) * (c * TANH_CST)                        # (32, 32)
    return w1, w2, wtpg, rs, wout


# ----------------------------------------------------------------------------------------------
# Pallas kernel: one (TILE_B, 32) batch tile per grid step.  All matmul operands are bf16
# (single MXU pass), accumulation is f32.  Elementwise work stays in f32 (v5e-safe).
# ----------------------------------------------------------------------------------------------
def _tpb_kernel(x_ref, w1_ref, w2_ref, wtpg_ref, rs_ref, wout_ref, y_ref):
    x = x_ref[...].astype(jnp.bfloat16)                                        # (Tb, 32)

    # lin1 / lin2: two independent (Tb,32)@(32,32) MXU matmuls (no lane-offset-32 value split).
    x1 = jnp.dot(x, w1_ref[...], preferred_element_type=jnp.float32)           # (Tb, 32) f32
    x2 = jnp.dot(x, w2_ref[...], preferred_element_type=jnp.float32)           # (Tb, 32) f32

    # Outer product x1 ⊗ x2 built directly in the (Tb, 1024) lane-dense layout; the multiply
    # is f32 (v5e has no bf16 VALU) and the result is cast to bf16 only at the MXU boundary.
    outer = jnp.repeat(x1, DIM, axis=1) * jnp.tile(x2, (1, DIM))               # (Tb, 1024) f32
    # TODO(synk): compact the ~84% structurally-zero K rows (1024 -> ~512-640) once a
    #             hand-built compacted lane layout for `outer` is validated.

    # FullyConnectedTensorProduct + gate linear fused: one (Tb,1024)@(1024,40) bf16 matmul.
    g = jnp.dot(outer.astype(jnp.bfloat16), wtpg_ref[...],
                preferred_element_type=jnp.float32)                            # (Tb, 40)

    act = jnp.tanh(g[:, :2 * MUL])                                             # (Tb, 16)
    # Gate replication 8 -> 24 on the MXU via a constant 0/1 selection matrix.
    gate = jnp.dot(act.astype(jnp.bfloat16), rs_ref[...],
                   preferred_element_type=jnp.float32)                         # (Tb, 24)
    gated_v = g[:, 2 * MUL:] * gate                                            # (Tb, 24)

    # lin_out straight into the e3nn output layout (TANH_CST folded into wout).
    z = jnp.concatenate([act[:, :MUL], gated_v], axis=1)                       # (Tb, 32)
    y_ref[...] = jnp.dot(z.astype(jnp.bfloat16), wout_ref[...],
                         preferred_element_type=jnp.float32)


def _round_up(n, m):
    return ((n + m - 1) // m) * m


@partial(jax.jit, static_argnames=("tile_b",))
def tensor_product_block(x, w2d, wtp, tile_b=512):
    """x: (B, 32) in e3nn layout -> (B, 32) in e3nn layout."""
    B = x.shape[0]
    weights = _prepare_weights(w2d, wtp)
    w1, w2, wtpg, rs, wout = [w.astype(jnp.bfloat16) for w in weights]

    # Keep >= 2 grid steps when possible so the ("parallel",) batch axis can be split across
    # v7x's two TensorCores (harmless on single-TC v5e/v6e).
    tile = max(8, min(tile_b, _round_up(pl.cdiv(B, 2), 8)))
    b_padded = _round_up(B, tile)
    if b_padded != B:
        x = jnp.pad(x, ((0, b_padded - B), (0, 0)))

    # VMEM sized from actual usage instead of a blanket cap: the lane-padded broadcast/reshape
    # temporaries of the outer-product construction dominate, so budget ~14x the logical
    # (tile, 1024) f32 outer plus double-buffered I/O tiles, resident bf16 weights and slack.
    big_tmp = tile * DIM * DIM * 4
    io_bytes = 2 * 2 * tile * DIM * 4
    w_bytes = 2 * 2 * (3 * DIM * DIM + DIM * DIM * GATE_DIM + 2 * MUL * 3 * MUL)
    vmem_limit = int(min(60 << 20, 14 * big_tmp + io_bytes + w_bytes + (4 << 20)))

    y = pl.pallas_call(
        _tpb_kernel,
        out_shape=jax.ShapeDtypeStruct((b_padded, DIM), jnp.float32),
        grid=(b_padded // tile,),
        in_specs=[
            pl.BlockSpec((tile, DIM), lambda i: (i, 0)),            # x tile
            pl.BlockSpec((DIM, DIM), lambda i: (0, 0)),             # w1   (resident)
            pl.BlockSpec((DIM, DIM), lambda i: (0, 0)),             # w2   (resident)
            pl.BlockSpec((DIM * DIM, GATE_DIM), lambda i: (0, 0)),  # wtpg (resident)
            pl.BlockSpec((2 * MUL, 3 * MUL), lambda i: (0, 0)),     # rs   (resident)
            pl.BlockSpec((DIM, DIM), lambda i: (0, 0)),             # wout (resident)
        ],
        out_specs=pl.BlockSpec((tile, DIM), lambda i: (i, 0)),
        compiler_params=pltpu.CompilerParams(
            dimension_semantics=("parallel",),
            vmem_limit_bytes=vmem_limit,
        ),
    )(x, w1, w2, wtpg, rs, wout)
    return y[:B]


# ----------------------------------------------------------------------------------------------
# Plain-JAX reference: independent implementation of the e3nn math (raw weights, explicit
# scalar/vector split and per-path sums) — it does NOT share the kernel's fused-weight algebra,
# so the error check validates the block-diagonal / fused-TP / folded-gate construction.
# ----------------------------------------------------------------------------------------------
def reference(x, w2d, wtp):
    B = x.shape[0]
    xs = x[:, :MUL]                                                   # (B, 8)
    xv = x[:, MUL:].reshape(B, MUL, 3).transpose(0, 2, 1)             # (B, 3, 8), xv[b, i, u]

    lin_s = lambda v, w: jnp.dot(v, w, precision=_PREC) * INV_SQRT_MUL
    lin_v = lambda v, w: jnp.einsum("biu,uw->biw", v, w, precision=_PREC) * INV_SQRT_MUL

    x1s, x1v = lin_s(xs, w2d[0]), lin_v(xv, w2d[1])
    x2s, x2v = lin_s(xs, w2d[2]), lin_v(xv, w2d[3])

    t_ss = jnp.einsum("bu,bv,uvw->bw", x1s, x2s, wtp[0], precision=_PREC)
    t_vv = jnp.einsum("biu,biv,uvw->bw", x1v, x2v, wtp[1], precision=_PREC) * INV_SQRT3
    tp_s = (t_ss + t_vv) * C_TP_SCALAR
    t_sv = jnp.einsum("bu,biv,uvw->biw", x1s, x2v, wtp[2], precision=_PREC) * INV_SQRT3
    t_vs = jnp.einsum("biu,bv,uvw->biw", x1v, x2s, wtp[3], precision=_PREC) * INV_SQRT3
    tp_v = (t_sv + t_vs) * C_TP_VECTOR

    g_s, g_g, g_v = lin_s(tp_s, w2d[4]), lin_s(tp_s, w2d[5]), lin_v(tp_v, w2d[6])
    act_s = jnp.tanh(g_s) * TANH_CST
    act_g = jnp.tanh(g_g) * TANH_CST
    gated_v = g_v * act_g[:, None, :]

    ys = lin_s(act_s, w2d[7])
    yv = lin_v(gated_v, w2d[8])
    return jnp.concatenate([ys, yv.transpose(0, 2, 1).reshape(B, MUL * 3)], axis=-1)


def init_params(key):
    k_2d, k_tp = jax.random.split(key)
    # e3nn initializes internal weights ~ N(0, 1)
    w2d = jax.random.normal(k_2d, (9, MUL, MUL), dtype=jnp.float32)
    wtp = jax.random.normal(k_tp, (4, MUL, MUL, MUL), dtype=jnp.float32)
    return w2d, wtp


if __name__ == "__main__":
    key = jax.random.PRNGKey(0)
    kx, kp = jax.random.split(key)
    B = 16
    x = jax.random.normal(kx, (B, DIM), dtype=jnp.float32)
    w2d, wtp = init_params(kp)

    y = tensor_product_block(x, w2d, wtp)
    y = jax.block_until_ready(y)

    y_ref = reference(x, w2d, wtp)
    assert y.shape == (B, DIM), y.shape
    # bf16-operand / f32-accumulate matmuls: compare against the f32 reference norm-wise.
    rel_err = jnp.linalg.norm(y - y_ref) / jnp.linalg.norm(y_ref)
    assert rel_err < 5e-2, f"Pallas kernel mismatch vs JAX reference: rel L2 err = {rel_err}"
    print("KERNEL_OK")
</pallas_src>

<mosaic_0001>
module attributes {stable_mosaic.version = 11 : i64} {
  func.func @_tpb_kernel(%arg0: i32, %arg1: memref<8x32xf32, #tpu.memory_space<vmem>>, %arg2: memref<32x32xbf16, #tpu.memory_space<vmem>>, %arg3: memref<32x32xbf16, #tpu.memory_space<vmem>>, %arg4: memref<1024x40xbf16, #tpu.memory_space<vmem>>, %arg5: memref<16x24xbf16, #tpu.memory_space<vmem>>, %arg6: memref<32x32xbf16, #tpu.memory_space<vmem>>, %arg7: memref<8x32xf32, #tpu.memory_space<vmem>>) attributes {dimension_semantics = [#tpu.dimension_semantics<parallel>], iteration_bounds = array<i64: 2>, scalar_prefetch = 0 : i64, scratch_operands = 0 : i64, tpu.core_type = #tpu.core_type<tc>, window_params = [{transform_indices = @transform_0, window_bounds = array<i64: 8, 32>}, {pipeline_mode = #tpu.pipeline_mode<synchronous>, transform_indices = @transform_1, window_bounds = array<i64: 32, 32>}, {pipeline_mode = #tpu.pipeline_mode<synchronous>, transform_indices = @transform_2, window_bounds = array<i64: 32, 32>}, {pipeline_mode = #tpu.pipeline_mode<synchronous>, transform_indices = @transform_3, window_bounds = array<i64: 1024, 40>}, {pipeline_mode = #tpu.pipeline_mode<synchronous>, transform_indices = @transform_4, window_bounds = array<i64: 16, 24>}, {pipeline_mode = #tpu.pipeline_mode<synchronous>, transform_indices = @transform_5, window_bounds = array<i64: 32, 32>}, {transform_indices = @transform_6, window_bounds = array<i64: 8, 32>}]} {
    %c0 = arith.constant 0 : index
    %c0_0 = arith.constant 0 : index
    %0 = vector.load %arg1[%c0, %c0_0] : memref<8x32xf32, #tpu.memory_space<vmem>>, vector<8x32xf32>
    %1 = arith.truncf %0 : vector<8x32xf32> to vector<8x32xbf16>
    %c0_1 = arith.constant 0 : index
    %c0_2 = arith.constant 0 : index
    %2 = vector.load %arg2[%c0_1, %c0_2] : memref<32x32xbf16, #tpu.memory_space<vmem>>, vector<32x32xbf16>
    %cst = arith.constant dense<0.000000e+00> : vector<8x32xf32>
    %3 = tpu.matmul %1, %2, %cst {dimension_numbers = #tpu.dot_dimension_numbers<[1], [0], [0], [1], [0, 0, 1, 1], [], []>} : vector<8x32xbf16>, vector<32x32xbf16>, vector<8x32xf32> -> vector<8x32xf32>
    %c0_3 = arith.constant 0 : index
    %c0_4 = arith.constant 0 : index
    %4 = vector.load %arg3[%c0_3, %c0_4] : memref<32x32xbf16, #tpu.memory_space<vmem>>, vector<32x32xbf16>
    %cst_5 = arith.constant dense<0.000000e+00> : vector<8x32xf32>
    %5 = tpu.matmul %1, %4, %cst_5 {dimension_numbers = #tpu.dot_dimension_numbers<[1], [0], [0], [1], [0, 0, 1, 1], [], []>} : vector<8x32xbf16>, vector<32x32xbf16>, vector<8x32xf32> -> vector<8x32xf32>
    %6 = vector.shape_cast %3 : vector<8x32xf32> to vector<8x32x1xf32>
    %7 = vector.broadcast %6 : vector<8x32x1xf32> to vector<8x32x32xf32>
    %8 = vector.shape_cast %7 : vector<8x32x32xf32> to vector<8x1024xf32>
    %9 = tpu.concatenate %5, %5, %5, %5, %5, %5, %5, %5, %5, %5, %5, %5, %5, %5, %5, %5, %5, %5, %5, %5, %5, %5, %5, %5, %5, %5, %5, %5, %5, %5, %5, %5 in 1 : vector<8x32xf32>, vector<8x32xf32>, vector<8x32xf32>, vector<8x32xf32>, vector<8x32xf32>, vector<8x32xf32>, vector<8x32xf32>, vector<8x32xf32>, vector<8x32xf32>, vector<8x32xf32>, vector<8x32xf32>, vector<8x32xf32>, vector<8x32xf32>, vector<8x32xf32>, vector<8x32xf32>, vector<8x32xf32>, vector<8x32xf32>, vector<8x32xf32>, vector<8x32xf32>, vector<8x32xf32>, vector<8x32xf32>, vector<8x32xf32>, vector<8x32xf32>, vector<8x32xf32>, vector<8x32xf32>, vector<8x32xf32>, vector<8x32xf32>, vector<8x32xf32>, vector<8x32xf32>, vector<8x32xf32>, vector<8x32xf32>, vector<8x32xf32> -> vector<8x1024xf32>
    %10 = arith.mulf %8, %9 : vector<8x1024xf32>
    %11 = arith.truncf %10 : vector<8x1024xf32> to vector<8x1024xbf16>
    %c0_6 = arith.constant 0 : index
    %c0_7 = arith.constant 0 : index
    %12 = vector.load %arg4[%c0_6, %c0_7] : memref<1024x40xbf16, #tpu.memory_space<vmem>>, vector<1024x40xbf16>
    %cst_8 = arith.constant dense<0.000000e+00> : vector<8x40xf32>
    %13 = tpu.matmul %11, %12, %cst_8 {dimension_numbers = #tpu.dot_dimension_numbers<[1], [0], [0], [1], [0, 0, 1, 1], [], []>} : vector<8x1024xbf16>, vector<1024x40xbf16>, vector<8x40xf32> -> vector<8x40xf32>
    %14 = vector.extract_strided_slice %13 {offsets = [0, 0], sizes = [8, 16], strides = [1, 1]} : vector<8x40xf32> to vector<8x16xf32>
    %15 = math.tanh %14 : vector<8x16xf32>
    %16 = arith.truncf %15 : vector<8x16xf32> to vector<8x16xbf16>
    %c0_9 = arith.constant 0 : index
    %c0_10 = arith.constant 0 : index
    %17 = vector.load %arg5[%c0_9, %c0_10] : memref<16x24xbf16, #tpu.memory_space<vmem>>, vector<16x24xbf16>
    %cst_11 = arith.constant dense<0.000000e+00> : vector<8x24xf32>
    %18 = tpu.matmul %16, %17, %cst_11 {dimension_numbers = #tpu.dot_dimension_numbers<[1], [0], [0], [1], [0, 0, 1, 1], [], []>} : vector<8x16xbf16>, vector<16x24xbf16>, vector<8x24xf32> -> vector<8x24xf32>
    %19 = vector.extract_strided_slice %13 {offsets = [0, 16], sizes = [8, 24], strides = [1, 1]} : vector<8x40xf32> to vector<8x24xf32>
    %20 = arith.mulf %19, %18 : vector<8x24xf32>
    %21 = vector.extract_strided_slice %15 {offsets = [0, 0], sizes = [8, 8], strides = [1, 1]} : vector<8x16xf32> to vector<8x8xf32>
    %22 = tpu.concatenate %21, %20 in 1 : vector<8x8xf32>, vector<8x24xf32> -> vector<8x32xf32>
    %23 = arith.truncf %22 : vector<8x32xf32> to vector<8x32xbf16>
    %c0_12 = arith.constant 0 : index
    %c0_13 = arith.constant 0 : index
    %24 = vector.load %arg6[%c0_12, %c0_13] : memref<32x32xbf16, #tpu.memory_space<vmem>>, vector<32x32xbf16>
    %cst_14 = arith.constant dense<0.000000e+00> : vector<8x32xf32>
    %25 = tpu.matmul %23, %24, %cst_14 {dimension_numbers = #tpu.dot_dimension_numbers<[1], [0], [0], [1], [0, 0, 1, 1], [], []>} : vector<8x32xbf16>, vector<32x32xbf16>, vector<8x32xf32> -> vector<8x32xf32>
    %c0_15 = arith.constant 0 : index
    %c0_16 = arith.constant 0 : index
    %26 = vector.load %arg7[%c0_15, %c0_16] : memref<8x32xf32, #tpu.memory_space<vmem>>, vector<8x32xf32>
    tpu.vector_store %arg7[%c0_15, %c0_16], %25 {strides = array<i32>} : memref<8x32xf32, #tpu.memory_space<vmem>>, vector<8x32xf32>,
    return
  }
  func.func @transform_0(%arg0: i32) -> (i32, i32) {
    %c0_i32 = arith.constant 0 : i32
    %c0_i32_0 = arith.constant 0 : i32
    return %arg0, %c0_i32 : i32, i32
  }
  func.func @transform_1(%arg0: i32) -> (i32, i32) {
    %c0_i32 = arith.constant 0 : i32
    %c0_i32_0 = arith.constant 0 : i32
    %c0_i32_1 = arith.constant 0 : i32
    return %c0_i32, %c0_i32_0 : i32, i32
  }
  func.func @transform_2(%arg0: i32) -> (i32, i32) {
    %c0_i32 = arith.constant 0 : i32
    %c0_i32_0 = arith.constant 0 : i32
    %c0_i32_1 = arith.constant 0 : i32
    return %c0_i32, %c0_i32_0 : i32, i32
  }
  func.func @transform_3(%arg0: i32) -> (i32, i32) {
    %c0_i32 = arith.constant 0 : i32
    %c0_i32_0 = arith.constant 0 : i32
    %c0_i32_1 = arith.constant 0 : i32
    return %c0_i32, %c0_i32_0 : i32, i32
  }
  func.func @transform_4(%arg0: i32) -> (i32, i32) {
    %c0_i32 = arith.constant 0 : i32
    %c0_i32_0 = arith.constant 0 : i32
    %c0_i32_1 = arith.constant 0 : i32
    return %c0_i32, %c0_i32_0 : i32, i32
  }
  func.func @transform_5(%arg0: i32) -> (i32, i32) {
    %c0_i32 = arith.constant 0 : i32
    %c0_i32_0 = arith.constant 0 : i32
    %c0_i32_1 = arith.constant 0 : i32
    return %c0_i32, %c0_i32_0 : i32, i32
  }
  func.func @transform_6(%arg0: i32) -> (i32, i32) {
    %c0_i32 = arith.constant 0 : i32
    %c0_i32_0 = arith.constant 0 : i32
    return %arg0, %c0_i32 : i32, i32
  }
}

</mosaic_0001>

<llo_original>
// kernel: tensor_product_block.1
$region0: #{tensor_product_block.1}
  #allocation0 [shape = 'u32[]', space=smem, size = 0x4, offset = 0x4, fixed_abs, tag = 'smem constant byte address 0x4 - core index']
  #allocation1 [shape = 'u32[144,128]{1,0:T(1,128)}', space=vmem, size = 0x12000, scoped, tag = 'internal scratch']
  %s0 = inlined_call_operand.vmem [shape: f32[16,32], index: 0, kind: input, shape index: {}]
  %s1 = inlined_call_operand.vmem [shape: bf16[32,32], index: 1, kind: input, shape index: {}]
  %s2 = inlined_call_operand.vmem [shape: bf16[32,32], index: 2, kind: input, shape index: {}]
  %s3 = inlined_call_operand.vmem [shape: bf16[1024,40], index: 3, kind: input, shape index: {}]
  %s4 = inlined_call_operand.vmem [shape: bf16[16,24], index: 4, kind: input, shape index: {}]
  %s5 = inlined_call_operand.vmem [shape: bf16[32,32], index: 5, kind: input, shape index: {}]
  %s6 = inlined_call_operand.hbm [shape: f32[16,32], index: 6, kind: output, shape index: {}]
  %s7 = sld [smem:[#allocation0]]
  $region57: #{tensor_product_block.1} parent=0
    _
  %s9 = ssub.s32 1, %s7
  %s10 = scalar_select 0, %s9, %s7
  $region1: #{tensor_product_block.1} parent=0
    #allocation2 [shape = 'u8[8192]{0}', space=vmem, size = 0x2000, scoped, tag = 'output window, operand 0']
    #allocation3 [shape = 's32[2]{0}', space=sflag, size = 0x8, scoped, tag = 'scoped memory for tensor_product_block.1']
    %11 = vsyncpa [#allocation3], 0
    %s12 = scalar_lea.sflag [#allocation3], 1
    %13 = vsyncpa %s12, 0
    loop: start=0, step=1, limit=4
    $region2: #{tensor_product_block.1} parent=1 // loop_pre_header
      _
    $region3: #{tensor_product_block.1} parent=1 // loop_header
      %s15 = sphi 0, %s19
      %p16 = scmp.ge.s32.totalorder %s15, 4
      %s25 = sphi 0, %s27
      %s28 = sphi 0, %s25
      %s29 = sphi 0, %s28
      %s45 = sphi 0, %s29
      %s49 = sphi 0, %s49
      %s51 = sphi 0, %s49
      %s52 = sphi 0, %s51
      %s66 = sphi 0, %s52
      %s70 = sphi 0, %s70
      %s72 = sphi 0, %s70
      %s73 = sphi 0, %s72
      %s87 = sphi 0, %s73
      %s91 = sphi 0, %s91
      %s93 = sphi 0, %s91
      %s94 = sphi 0, %s93
      %s108 = sphi 0, %s94
      %s112 = sphi 0, %s112
      %s114 = sphi 0, %s112
      %s115 = sphi 0, %s114
      %s129 = sphi 0, %s115
      %s133 = sphi 0, %s133
      %s135 = sphi 0, %s133
      %s136 = sphi 0, %s135
      %s150 = sphi 0, %s136
      %s156 = sphi 0, %s158
      %s159 = sphi 0, %s156
      %s160 = sphi 0, %s159
      %s176 = sphi 0, %s160
    $region4: #{tensor_product_block.1} parent=1 // loop_header_branch
      %18 = sbr.rel (%p16) target = $region8
    $region5: #{tensor_product_block.1} parent=1 // loop_body
      %s20 = ssub.s32 %s15, 1
      %s21 = ssub.s32 %s15, 2
      %s22 = sadd.s32 %s15, 1
      %s23 = ssub.s32 %s15, %s22
      %p24 = scmp.eq.s32.totalorder %s23, 0
      %s26 = sadd.s32 %s25, 1
      %s27 = scalar_select %p24, %s25, %s26
      %p30 = pneg %p24
      %p31 = scmp.eq.s32.totalorder %s15, 1
      %p32 = por %p30, %p31
      %p33 = scmp.ne.s32.totalorder %s25, %s28
      %p34 = scmp.eq.s32.totalorder %s15, 0
      %p35 = por %p33, %p34
      %p36 = scmp.ne.s32.totalorder %s25, %s28
      %p37 = scmp.eq.s32.totalorder %s20, 1
      %p38 = por %p36, %p37
      %p39 = scmp.ne.s32.totalorder %s28, %s29
      %p40 = scmp.eq.s32.totalorder %s20, 0
      %p41 = por %p39, %p40
      %p42 = scmp.ne.s32.totalorder %s28, %s29
      %p43 = scmp.eq.s32.totalorder %s21, 1
      %p44 = por %p42, %p43
      %p46 = scmp.ne.s32.totalorder %s29, %s45
      %p47 = scmp.eq.s32.totalorder %s21, 0
      %p48 = por %p46, %p47
      %s50 = sadd.s32 %s49, 1
      %p53 = scmp.eq.s32.totalorder %s15, 1
      %p54 = scmp.ne.s32.totalorder %s49, %s51
      %p55 = scmp.eq.s32.totalorder %s15, 0
      %p56 = por %p54, %p55
      %p57 = scmp.ne.s32.totalorder %s49, %s51
      %p58 = scmp.eq.s32.totalorder %s20, 1
      %p59 = por %p57, %p58
      %p60 = scmp.ne.s32.totalorder %s51, %s52
      %p61 = scmp.eq.s32.totalorder %s20, 0
      %p62 = por %p60, %p61
      %p63 = scmp.ne.s32.totalorder %s51, %s52
      %p64 = scmp.eq.s32.totalorder %s21, 1
      %p65 = por %p63, %p64
      %p67 = scmp.ne.s32.totalorder %s52, %s66
      %p68 = scmp.eq.s32.totalorder %s21, 0
      %p69 = por %p67, %p68
      %s71 = sadd.s32 %s70, 1
      %p74 = scmp.eq.s32.totalorder %s15, 1
      %p75 = scmp.ne.s32.totalorder %s70, %s72
      %p76 = scmp.eq.s32.totalorder %s15, 0
      %p77 = por %p75, %p76
      %p78 = scmp.ne.s32.totalorder %s70, %s72
      %p79 = scmp.eq.s32.totalorder %s20, 1
      %p80 = por %p78, %p79
      %p81 = scmp.ne.s32.totalorder %s72, %s73
      %p82 = scmp.eq.s32.totalorder %s20, 0
      %p83 = por %p81, %p82
      %p84 = scmp.ne.s32.totalorder %s72, %s73
      %p85 = scmp.eq.s32.totalorder %s21, 1
      %p86 = por %p84, %p85
      %p88 = scmp.ne.s32.totalorder %s73, %s87
      %p89 = scmp.eq.s32.totalorder %s21, 0
      %p90 = por %p88, %p89
      %s92 = sadd.s32 %s91, 1
      %p95 = scmp.eq.s32.totalorder %s15, 1
      %p96 = scmp.ne.s32.totalorder %s91, %s93
      %p97 = scmp.eq.s32.totalorder %s15, 0
      %p98 = por %p96, %p97
      %p99 = scmp.ne.s32.totalorder %s91, %s93
      %p100 = scmp.eq.s32.totalorder %s20, 1
      %p101 = por %p99, %p100
      %p102 = scmp.ne.s32.totalorder %s93, %s94
      %p103 = scmp.eq.s32.totalorder %s20, 0
      %p104 = por %p102, %p103
      %p105 = scmp.ne.s32.totalorder %s93, %s94
      %p106 = scmp.eq.s32.totalorder %s21, 1
      %p107 = por %p105, %p106
      %p109 = scmp.ne.s32.totalorder %s94, %s108
      %p110 = scmp.eq.s32.totalorder %s21, 0
      %p111 = por %p109, %p110
      %s113 = sadd.s32 %s112, 1
      %p116 = scmp.eq.s32.totalorder %s15, 1
      %p117 = scmp.ne.s32.totalorder %s112, %s114
      %p118 = scmp.eq.s32.totalorder %s15, 0
      %p119 = por %p117, %p118
      %p120 = scmp.ne.s32.totalorder %s112, %s114
      %p121 = scmp.eq.s32.totalorder %s20, 1
      %p122 = por %p120, %p121
      %p123 = scmp.ne.s32.totalorder %s114, %s115
      %p124 = scmp.eq.s32.totalorder %s20, 0
      %p125 = por %p123, %p124
      %p126 = scmp.ne.s32.totalorder %s114, %s115
      %p127 = scmp.eq.s32.totalorder %s21, 1
      %p128 = por %p126, %p127
      %p130 = scmp.ne.s32.totalorder %s115, %s129
      %p131 = scmp.eq.s32.totalorder %s21, 0
      %p132 = por %p130, %p131
      %s134 = sadd.s32 %s133, 1
      %p137 = scmp.eq.s32.totalorder %s15, 1
      %p138 = scmp.ne.s32.totalorder %s133, %s135
      %p139 = scmp.eq.s32.totalorder %s15, 0
      %p140 = por %p138, %p139
      %p141 = scmp.ne.s32.totalorder %s133, %s135
      %p142 = scmp.eq.s32.totalorder %s20, 1
      %p143 = por %p141, %p142
      %p144 = scmp.ne.s32.totalorder %s135, %s136
      %p145 = scmp.eq.s32.totalorder %s20, 0
      %p146 = por %p144, %p145
      %p147 = scmp.ne.s32.totalorder %s135, %s136
      %p148 = scmp.eq.s32.totalorder %s21, 1
      %p149 = por %p147, %p148
      %p151 = scmp.ne.s32.totalorder %s136, %s150
      %p152 = scmp.eq.s32.totalorder %s21, 0
      %p153 = por %p151, %p152
      %s154 = ssub.s32 %s15, %s22
      %p155 = scmp.eq.s32.totalorder %s154, 0
      %s157 = sadd.s32 %s156, 1
      %s158 = scalar_select %p155, %s156, %s157
      %p161 = pneg %p155
      %p162 = scmp.eq.s32.totalorder %s15, 1
      %p163 = por %p161, %p162
      %p164 = scmp.ne.s32.totalorder %s156, %s159
      %p165 = scmp.eq.s32.totalorder %s15, 0
      %p166 = por %p164, %p165
      %p167 = scmp.ne.s32.totalorder %s156, %s159
      %p168 = scmp.eq.s32.totalorder %s20, 1
      %p169 = por %p167, %p168
      %p170 = scmp.ne.s32.totalorder %s159, %s160
      %p171 = scmp.eq.s32.totalorder %s20, 0
      %p172 = por %p170, %p171
      %p173 = scmp.ne.s32.totalorder %s159, %s160
      %p174 = scmp.eq.s32.totalorder %s21, 1
      %p175 = por %p173, %p174
      %p177 = scmp.ne.s32.totalorder %s160, %s176
      %p178 = scmp.eq.s32.totalorder %s21, 0
      %p179 = por %p177, %p178
      %p180 = scmp.le.s32.totalorder 1, %s15
      %p181 = scmp.lt.s32.totalorder %s15, 3
      %p182 = pnand %p180, %p181
      %p183 = pneg %p182
      // Predicated region
      $region9: #{tensor_product_block.1} parent=5 // pred_check
        _
      $region10: #{tensor_product_block.1} parent=5 // pred_check_branch
        %185 = sbr.rel (%p182) target = $region12
      $region11: #{tensor_product_block.1} parent=5 // pred_region
        %s186 = ssub.s32 %s15, 1
        // Predicated region
        $region13: #{tensor_product_block.1} parent=11 // pred_check
          %p187 = pneg %p62
        $region14: #{tensor_product_block.1} parent=11 // pred_check_branch
          %189 = sbr.rel (%p187) target = $region16
        $region15: #{tensor_product_block.1} parent=11 // pred_region
          _
        $region16: #{tensor_product_block.1} parent=11 // pred_fallthru
          _
        // Predicated region
        $region17: #{tensor_product_block.1} parent=11 // pred_check
          %p190 = pneg %p83
        $region18: #{tensor_product_block.1} parent=11 // pred_check_branch
          %192 = sbr.rel (%p190) target = $region20
        $region19: #{tensor_product_block.1} parent=11 // pred_region
          _
        $region20: #{tensor_product_block.1} parent=11 // pred_fallthru
          _
        // Predicated region
        $region21: #{tensor_product_block.1} parent=11 // pred_check
          %p193 = pneg %p104
        $region22: #{tensor_product_block.1} parent=11 // pred_check_branch
          %195 = sbr.rel (%p193) target = $region24
        $region23: #{tensor_product_block.1} parent=11 // pred_region
          _
        $region24: #{tensor_product_block.1} parent=11 // pred_fallthru
          _
        // Predicated region
        $region25: #{tensor_product_block.1} parent=11 // pred_check
          %p196 = pneg %p125
        $region26: #{tensor_product_block.1} parent=11 // pred_check_branch
          %198 = sbr.rel (%p196) target = $region28
        $region27: #{tensor_product_block.1} parent=11 // pred_region
          _
        $region28: #{tensor_product_block.1} parent=11 // pred_fallthru
          _
        // Predicated region
        $region29: #{tensor_product_block.1} parent=11 // pred_check
          %p199 = pneg %p146
        $region30: #{tensor_product_block.1} parent=11 // pred_check_branch
          %201 = sbr.rel (%p199) target = $region32
        $region31: #{tensor_product_block.1} parent=11 // pred_region
          _
        $region32: #{tensor_product_block.1} parent=11 // pred_fallthru
          _
      $region12: #{tensor_product_block.1} parent=5 // pred_fallthru
        _
      %p202 = scmp.lt.s32.totalorder %s15, 2
      // Predicated region
      $region33: #{tensor_product_block.1} parent=5 // pred_check
        %p203 = pneg %p202
      $region34: #{tensor_product_block.1} parent=5 // pred_check_branch
        %205 = sbr.rel (%p203) target = $region36
      $region35: #{tensor_product_block.1} parent=5 // pred_region
        // Predicated region
        $region37: #{tensor_product_block.1} parent=35 // pred_check
          %p206 = pneg %p35
        $region38: #{tensor_product_block.1} parent=35 // pred_check_branch
          %208 = sbr.rel (%p206) target = $region40
        $region39: #{tensor_product_block.1} parent=35 // pred_region
          %p209 = scmp.lt.s32.totalorder %s15, 1
          %s210 = scalar_select %p209, %s15, 1
          %s211 = smul.addr %s210, 8
          %s212 = scalar_lea.vmem %s0, %s211
        $region40: #{tensor_product_block.1} parent=35 // pred_fallthru
          _
      $region36: #{tensor_product_block.1} parent=5 // pred_fallthru
        _
      %p213 = scmp.le.s32.totalorder 1, %s15
      %p214 = scmp.lt.s32.totalorder %s15, 3
      %p215 = pnand %p213, %p214
      %p216 = pneg %p215
      // Predicated region
      $region41: #{tensor_product_block.1} parent=5 // pred_check
        _
      $region42: #{tensor_product_block.1} parent=5 // pred_check_branch
        %218 = sbr.rel (%p215) target = $region44
      $region43: #{tensor_product_block.1} parent=5 // pred_region
        %s219 = ssub.s32 %s15, 1
        %p220 = scmp.lt.s32.totalorder %s20, 1
        %s221 = scalar_select %p220, %s20, 1
        %s222 = smul.addr %s221, 8
        %s223 = scalar_lea.vmem %s0, %s222
        %p224 = pneg %p41
        %p225 = pneg %p38
        %p226 = pneg %p62
        %p227 = pneg %p59
        %p228 = pneg %p83
        %p229 = pneg %p80
        %p230 = pneg %p104
        %p231 = pneg %p101
        %p232 = pneg %p125
        %p233 = pneg %p122
        %p234 = pneg %p146
        %p235 = pneg %p143
        %p236 = pneg %p172
        %p237 = pneg %p169
        %s238 = sand.u32 %s159, 1
        %s239 = scalar_lea.sflag [#allocation3], %s238
        %s240 = sand.u32 %s159, 1
        %s241 = smul.addr %s240, 8
        %s242 = scalar_lea.vmem [#allocation2], %s241
        %p243 = scmp.lt.s32.totalorder %s20, 1
        %s244 = scalar_select %p243, %s20, 1
        %s245 = smul.addr %s244, 8
        %s246 = scalar_lea.vmem %s0, %s245
        %v248 = vld [vmem:[%s246] sm:$0xff]
        %v249 = vpack.c.bf16 %v248, %v248
        %v250 = vld [vmem:[%s1] sm:$0xf]
        %v251 = vld [vmem:[%s1 + $0x4] sm:$0xf]
        %v252 = vld [vmem:[%s1 + $0x8] sm:$0xf]
        %v253 = vld [vmem:[%s1 + $0xc] sm:$0xf]
        %v258 = vunpack.c.l.b16 %v250
        %v259 = vunpack.c.l.b16 %v251
        %v260 = vunpack.c.l.b16 %v252
        %v261 = vunpack.c.l.b16 %v253
        %v262 = vpack.c.b16 %v259, %v258
        %v263 = vpack.c.b16 %v261, %v260
        %vm266 = vcmask 261120
        %v268 = vsel %vm266, %v249, 0
        %270 = vmatprep.subr.bf16.mxu0 0
        %271 = vmatpush1.bf16.msra.mxu0 %v262
        %272 = vmatprep.subr.bf16.mxu0 0
        %273 = vmatpush1.bf16.msra.mxu0 %v263
        %274 = vmatprep.subr.bf16.mxu0 0
        %275 = vmatpush1.bf16.msra.mxu0 0
        %276 = vmatprep.subr.bf16.mxu0 0
        %277 = vmatpush1.bf16.msra.mxu0 0
        %278 = vmatprep.subr.bf16.mxu0 0
        %279 = vmatpush1.bf16.msra.mxu0 0
        %280 = vmatprep.subr.bf16.mxu0 0
        %281 = vmatpush1.bf16.msra.mxu0 0
        %282 = vmatprep.subr.bf16.mxu0 0
        %283 = vmatpush1.bf16.msra.mxu0 0
        %284 = vmatprep.subr.bf16.mxu0 0
        %285 = vmatpush1.bf16.msra.mxu0 0
        %286 = vmatprep.subr.bf16.mxu0 0
        %287 = vmatpush1.bf16.msra.mxu0 0
        %288 = vmatprep.subr.bf16.mxu0 0
        %289 = vmatpush1.bf16.msra.mxu0 0
        %290 = vmatprep.subr.bf16.mxu0 0
        %291 = vmatpush1.bf16.msra.mxu0 0
        %292 = vmatprep.subr.bf16.mxu0 0
        %293 = vmatpush1.bf16.msra.mxu0 0
        %294 = vmatprep.subr.bf16.mxu0 0
        %295 = vmatpush1.bf16.msra.mxu0 0
        %296 = vmatprep.subr.bf16.mxu0 0
        %297 = vmatpush1.bf16.msra.mxu0 0
        %298 = vmatprep.subr.bf16.mxu0 0
        %299 = vmatpush1.bf16.msra.mxu0 0
        %300 = vmatprep.subr.bf16.mxu0 0
        %301 = vmatpush1.bf16.msra.mxu0 0
        %302 = vmatprep.mubr.bf16.mxu0 0
        %303 = vmatmul.mubr.bf16.gmra.mrb[0].mxu0 %v268
        %v304 = vpop.f32.mrb[0].mxu0
        %v305 = vadd.f32 0.0, %v304
        %v306 = vpop.f32.mrb[0].mxu0
        %v307 = vpop.f32.mrb[0].mxu0
        %v308 = vpop.f32.mrb[0].mxu0
        %309 = vdwg.mxu0
        %v310 = vld [vmem:[%s2] sm:$0xf]
        %v311 = vld [vmem:[%s2 + $0x4] sm:$0xf]
        %v312 = vld [vmem:[%s2 + $0x8] sm:$0xf]
        %v313 = vld [vmem:[%s2 + $0xc] sm:$0xf]
        %v318 = vunpack.c.l.b16 %v310
        %v319 = vunpack.c.l.b16 %v311
        %v320 = vunpack.c.l.b16 %v312
        %v321 = vunpack.c.l.b16 %v313
        %v322 = vpack.c.b16 %v319, %v318
        %v323 = vpack.c.b16 %v321, %v320
        %326 = vmatprep.subr.bf16.mxu0 0
        %327 = vmatpush1.bf16.msra.mxu0 %v322
        %328 = vmatprep.subr.bf16.mxu0 0
        %329 = vmatpush1.bf16.msra.mxu0 %v323
        %330 = vmatprep.subr.bf16.mxu0 0
        %331 = vmatpush1.bf16.msra.mxu0 0
        %332 = vmatprep.subr.bf16.mxu0 0
        %333 = vmatpush1.bf16.msra.mxu0 0
        %334 = vmatprep.subr.bf16.mxu0 0
        %335 = vmatpush1.bf16.msra.mxu0 0
        %336 = vmatprep.subr.bf16.mxu0 0
        %337 = vmatpush1.bf16.msra.mxu0 0
        %338 = vmatprep.subr.bf16.mxu0 0
        %339 = vmatpush1.bf16.msra.mxu0 0
        %340 = vmatprep.subr.bf16.mxu0 0
        %341 = vmatpush1.bf16.msra.mxu0 0
        %342 = vmatprep.subr.bf16.mxu0 0
        %343 = vmatpush1.bf16.msra.mxu0 0
        %344 = vmatprep.subr.bf16.mxu0 0
        %345 = vmatpush1.bf16.msra.mxu0 0
        %346 = vmatprep.subr.bf16.mxu0 0
        %347 = vmatpush1.bf16.msra.mxu0 0
        %348 = vmatprep.subr.bf16.mxu0 0
        %349 = vmatpush1.bf16.msra.mxu0 0
        %350 = vmatprep.subr.bf16.mxu0 0
        %351 = vmatpush1.bf16.msra.mxu0 0
        %352 = vmatprep.subr.bf16.mxu0 0
        %353 = vmatpush1.bf16.msra.mxu0 0
        %354 = vmatprep.subr.bf16.mxu0 0
        %355 = vmatpush1.bf16.msra.mxu0 0
        %356 = vmatprep.subr.bf16.mxu0 0
        %357 = vmatpush1.bf16.msra.mxu0 0
        %358 = vmatprep.mubr.bf16.mxu0 0
        %359 = vmatmul.mubr.bf16.gmra.mrb[0].mxu0 %v268
        %v360 = vpop.f32.mrb[0].mxu0
        %v361 = vadd.f32 0.0, %v360
        %v362 = vpop.f32.mrb[0].mxu0
        %v363 = vpop.f32.mrb[0].mxu0
        %v364 = vpop.f32.mrb[0].mxu0
        %365 = vdwg.mxu0
        %v366 = vlaneseq
        %v367 = vshrl.u32 %v366, 7
        %v368 = vsub.s32 0, %v367
        %v369 = vrot.slane %v305, %v368
        %371 = vbcast.lane.b32.xlu0 %v369, 256
        %v372 = vpop.permute.xlu0 %371
        %s374 = sor.u32 256, 8
        %375 = vbcast.lane.b32.xlu0 %v369, %s374
        %v376 = vpop.permute.xlu0 %375
        %s378 = sor.u32 256, 16
        %379 = vbcast.lane.b32.xlu0 %v369, %s378
        %v380 = vpop.permute.xlu0 %379
        %s382 = sor.u32 256, 24
        %383 = vbcast.lane.b32.xlu0 %v369, %s382
        %v384 = vpop.permute.xlu0 %383
        %v385 = vlaneseq
        %v386 = vshrl.u32 %v385, 7
        %v387 = vsub.s32 1, %v386
        %v388 = vrot.slane %v305, %v387
        %390 = vbcast.lane.b32.xlu0 %v388, 256
        %v391 = vpop.permute.xlu0 %390
        %s393 = sor.u32 256, 8
        %394 = vbcast.lane.b32.xlu0 %v388, %s393
        %v395 = vpop.permute.xlu0 %394
        %s397 = sor.u32 256, 16
        %398 = vbcast.lane.b32.xlu0 %v388, %s397
        %v399 = vpop.permute.xlu0 %398
        %s401 = sor.u32 256, 24
        %402 = vbcast.lane.b32.xlu0 %v388, %s401
        %v403 = vpop.permute.xlu0 %402
        %v404 = vlaneseq
        %v405 = vshrl.u32 %v404, 7
        %v406 = vsub.s32 2, %v405
        %v407 = vrot.slane %v305, %v406
        %409 = vbcast.lane.b32.xlu0 %v407, 256
        %v410 = vpop.permute.xlu0 %409
        %s412 = sor.u32 256, 8
        %413 = vbcast.lane.b32.xlu0 %v407, %s412
        %v414 = vpop.permute.xlu0 %413
        %s416 = sor.u32 256, 16
        %417 = vbcast.lane.b32.xlu0 %v407, %s416
        %v418 = vpop.permute.xlu0 %417
        %s420 = sor.u32 256, 24
        %421 = vbcast.lane.b32.xlu0 %v407, %s420
        %v422 = vpop.permute.xlu0 %421
        %v423 = vlaneseq
        %v424 = vshrl.u32 %v423, 7
        %v425 = vsub.s32 3, %v424
        %v426 = vrot.slane %v305, %v425
        %428 = vbcast.lane.b32.xlu0 %v426, 256
        %v429 = vpop.permute.xlu0 %428
        %s431 = sor.u32 256, 8
        %432 = vbcast.lane.b32.xlu0 %v426, %s431
        %v433 = vpop.permute.xlu0 %432
        %s435 = sor.u32 256, 16
        %436 = vbcast.lane.b32.xlu0 %v426, %s435
        %v437 = vpop.permute.xlu0 %436
        %s439 = sor.u32 256, 24
        %440 = vbcast.lane.b32.xlu0 %v426, %s439
        %v441 = vpop.permute.xlu0 %440
        %v442 = vlaneseq
        %v443 = vshrl.u32 %v442, 7
        %v444 = vsub.s32 4, %v443
        %v445 = vrot.slane %v305, %v444
        %447 = vbcast.lane.b32.xlu0 %v445, 256
        %v448 = vpop.permute.xlu0 %447
        %s450 = sor.u32 256, 8
        %451 = vbcast.lane.b32.xlu0 %v445, %s450
        %v452 = vpop.permute.xlu0 %451
        %s454 = sor.u32 256, 16
        %455 = vbcast.lane.b32.xlu0 %v445, %s454
        %v456 = vpop.permute.xlu0 %455
        %s458 = sor.u32 256, 24
        %459 = vbcast.lane.b32.xlu0 %v445, %s458
        %v460 = vpop.permute.xlu0 %459
        %v461 = vlaneseq
        %v462 = vshrl.u32 %v461, 7
        %v463 = vsub.s32 5, %v462
        %v464 = vrot.slane %v305, %v463
        %466 = vbcast.lane.b32.xlu0 %v464, 256
        %v467 = vpop.permute.xlu0 %466
        %s469 = sor.u32 256, 8
        %470 = vbcast.lane.b32.xlu0 %v464, %s469
        %v471 = vpop.permute.xlu0 %470
        %s473 = sor.u32 256, 16
        %474 = vbcast.lane.b32.xlu0 %v464, %s473
        %v475 = vpop.permute.xlu0 %474
        %s477 = sor.u32 256, 24
        %478 = vbcast.lane.b32.xlu0 %v464, %s477
        %v479 = vpop.permute.xlu0 %478
        %v480 = vlaneseq
        %v481 = vshrl.u32 %v480, 7
        %v482 = vsub.s32 6, %v481
        %v483 = vrot.slane %v305, %v482
        %485 = vbcast.lane.b32.xlu0 %v483, 256
        %v486 = vpop.permute.xlu0 %485
        %s488 = sor.u32 256, 8
        %489 = vbcast.lane.b32.xlu0 %v483, %s488
        %v490 = vpop.permute.xlu0 %489
        %s492 = sor.u32 256, 16
        %493 = vbcast.lane.b32.xlu0 %v483, %s492
        %v494 = vpop.permute.xlu0 %493
        %s496 = sor.u32 256, 24
        %497 = vbcast.lane.b32.xlu0 %v483, %s496
        %v498 = vpop.permute.xlu0 %497
        %v499 = vlaneseq
        %v500 = vshrl.u32 %v499, 7
        %v501 = vsub.s32 7, %v500
        %v502 = vrot.slane %v305, %v501
        %504 = vbcast.lane.b32.xlu0 %v502, 256
        %v505 = vpop.permute.xlu0 %504
        %s507 = sor.u32 256, 8
        %508 = vbcast.lane.b32.xlu0 %v502, %s507
        %v509 = vpop.permute.xlu0 %508
        %s511 = sor.u32 256, 16
        %512 = vbcast.lane.b32.xlu0 %v502, %s511
        %v513 = vpop.permute.xlu0 %512
        %s515 = sor.u32 256, 24
        %516 = vbcast.lane.b32.xlu0 %v502, %s515
        %v517 = vpop.permute.xlu0 %516
        %v518 = vcombine.low %v372, %v410
        %v519 = vcombine.high %v372, %v410
        %v521 = vunpack.c.l.s4 1983009808
        %v522 = vunpack.c.0.s8 %v521
        %v523 = vlaneseq
        %v524 = vshrl.u32 %v523, 7
        %v525 = vsub.s32 %v522, %v524
        %v526 = vrot.slane %v518, %v525
        %v528 = vunpack.c.l.s4 1983009808
        %v529 = vunpack.c.0.s8 %v528
        %v530 = vlaneseq
        %v531 = vshrl.u32 %v530, 7
        %v532 = vsub.s32 %v529, %v531
        %v533 = vrot.slane %v519, %v532
        %v534 = vcombine.low %v391, %v429
        %v535 = vcombine.high %v391, %v429
        %v537 = vunpack.c.l.s4 1983009808
        %v538 = vunpack.c.0.s8 %v537
        %v539 = vlaneseq
        %v540 = vshrl.u32 %v539, 7
        %v541 = vsub.s32 %v538, %v540
        %v542 = vrot.slane %v534, %v541
        %v544 = vunpack.c.l.s4 1983009808
        %v545 = vunpack.c.0.s8 %v544
        %v546 = vlaneseq
        %v547 = vshrl.u32 %v546, 7
        %v548 = vsub.s32 %v545, %v547
        %v549 = vrot.slane %v535, %v548
        %v550 = vcombine.low %v448, %v486
        %v551 = vcombine.high %v448, %v486
        %v553 = vunpack.c.l.s4 1983009808
        %v554 = vunpack.c.0.s8 %v553
        %v555 = vlaneseq
        %v556 = vshrl.u32 %v555, 7
        %v557 = vsub.s32 %v554, %v556
        %v558 = vrot.slane %v550, %v557
        %v560 = vunpack.c.l.s4 1983009808
        %v561 = vunpack.c.0.s8 %v560
        %v562 = vlaneseq
        %v563 = vshrl.u32 %v562, 7
        %v564 = vsub.s32 %v561, %v563
        %v565 = vrot.slane %v551, %v564
        %v566 = vcombine.low %v467, %v505
        %v567 = vcombine.high %v467, %v505
        %v569 = vunpack.c.l.s4 1983009808
        %v570 = vunpack.c.0.s8 %v569
        %v571 = vlaneseq
        %v572 = vshrl.u32 %v571, 7
        %v573 = vsub.s32 %v570, %v572
        %v574 = vrot.slane %v566, %v573
        %v576 = vunpack.c.l.s4 1983009808
        %v577 = vunpack.c.0.s8 %v576
        %v578 = vlaneseq
        %v579 = vshrl.u32 %v578, 7
        %v580 = vsub.s32 %v577, %v579
        %v581 = vrot.slane %v567, %v580
        %v582 = vcombine.low %v526, %v542
        %v583 = vcombine.high %v526, %v542
        %v585 = vunpack.c.l.s4 1934713408
        %v586 = vunpack.c.0.s8 %v585
        %v587 = vlaneseq
        %v588 = vshrl.u32 %v587, 7
        %v589 = vsub.s32 %v586, %v588
        %v590 = vrot.slane %v582, %v589
        %v592 = vunpack.c.l.s4 1934713408
        %v593 = vunpack.c.0.s8 %v592
        %v594 = vlaneseq
        %v595 = vshrl.u32 %v594, 7
        %v596 = vsub.s32 %v593, %v595
        %v597 = vrot.slane %v583, %v596
        %v598 = vcombine.low %v533, %v549
        %v599 = vcombine.high %v533, %v549
        %v601 = vunpack.c.l.s4 1934713408
        %v602 = vunpack.c.0.s8 %v601
        %v603 = vlaneseq
        %v604 = vshrl.u32 %v603, 7
        %v605 = vsub.s32 %v602, %v604
        %v606 = vrot.slane %v598, %v605
        %v608 = vunpack.c.l.s4 1934713408
        %v609 = vunpack.c.0.s8 %v608
        %v610 = vlaneseq
        %v611 = vshrl.u32 %v610, 7
        %v612 = vsub.s32 %v609, %v611
        %v613 = vrot.slane %v599, %v612
        %v614 = vcombine.low %v558, %v574
        %v615 = vcombine.high %v558, %v574
        %v617 = vunpack.c.l.s4 1934713408
        %v618 = vunpack.c.0.s8 %v617
        %v619 = vlaneseq
        %v620 = vshrl.u32 %v619, 7
        %v621 = vsub.s32 %v618, %v620
        %v622 = vrot.slane %v614, %v621
        %v624 = vunpack.c.l.s4 1934713408
        %v625 = vunpack.c.0.s8 %v624
        %v626 = vlaneseq
        %v627 = vshrl.u32 %v626, 7
        %v628 = vsub.s32 %v625, %v627
        %v629 = vrot.slane %v615, %v628
        %v630 = vcombine.low %v565, %v581
        %v631 = vcombine.high %v565, %v581
        %v633 = vunpack.c.l.s4 1934713408
        %v634 = vunpack.c.0.s8 %v633
        %v635 = vlaneseq
        %v636 = vshrl.u32 %v635, 7
        %v637 = vsub.s32 %v634, %v636
        %v638 = vrot.slane %v630, %v637
        %v640 = vunpack.c.l.s4 1934713408
        %v641 = vunpack.c.0.s8 %v640
        %v642 = vlaneseq
        %v643 = vshrl.u32 %v642, 7
        %v644 = vsub.s32 %v641, %v643
        %v645 = vrot.slane %v631, %v644
        %v646 = vcombine.low %v590, %v622
        %v647 = vcombine.high %v590, %v622
        %v648 = vcombine.low %v597, %v629
        %v649 = vcombine.high %v597, %v629
        %v650 = vcombine.low %v606, %v638
        %v651 = vcombine.high %v606, %v638
        %v652 = vcombine.low %v613, %v645
        %v653 = vcombine.high %v613, %v645
        %v654 = vcombine.low %v376, %v414
        %v655 = vcombine.high %v376, %v414
        %v657 = vunpack.c.l.s4 1983009808
        %v658 = vunpack.c.0.s8 %v657
        %v659 = vlaneseq
        %v660 = vshrl.u32 %v659, 7
        %v661 = vsub.s32 %v658, %v660
        %v662 = vrot.slane %v654, %v661
        %v664 = vunpack.c.l.s4 1983009808
        %v665 = vunpack.c.0.s8 %v664
        %v666 = vlaneseq
        %v667 = vshrl.u32 %v666, 7
        %v668 = vsub.s32 %v665, %v667
        %v669 = vrot.slane %v655, %v668
        %v670 = vcombine.low %v395, %v433
        %v671 = vcombine.high %v395, %v433
        %v673 = vunpack.c.l.s4 1983009808
        %v674 = vunpack.c.0.s8 %v673
        %v675 = vlaneseq
        %v676 = vshrl.u32 %v675, 7
        %v677 = vsub.s32 %v674, %v676
        %v678 = vrot.slane %v670, %v677
        %v680 = vunpack.c.l.s4 1983009808
        %v681 = vunpack.c.0.s8 %v680
        %v682 = vlaneseq
        %v683 = vshrl.u32 %v682, 7
        %v684 = vsub.s32 %v681, %v683
        %v685 = vrot.slane %v671, %v684
        %v686 = vcombine.low %v452, %v490
        %v687 = vcombine.high %v452, %v490
        %v689 = vunpack.c.l.s4 1983009808
        %v690 = vunpack.c.0.s8 %v689
        %v691 = vlaneseq
        %v692 = vshrl.u32 %v691, 7
        %v693 = vsub.s32 %v690, %v692
        %v694 = vrot.slane %v686, %v693
        %v696 = vunpack.c.l.s4 1983009808
        %v697 = vunpack.c.0.s8 %v696
        %v698 = vlaneseq
        %v699 = vshrl.u32 %v698, 7
        %v700 = vsub.s32 %v697, %v699
        %v701 = vrot.slane %v687, %v700
        %v702 = vcombine.low %v471, %v509
        %v703 = vcombine.high %v471, %v509
        %v705 = vunpack.c.l.s4 1983009808
        %v706 = vunpack.c.0.s8 %v705
        %v707 = vlaneseq
        %v708 = vshrl.u32 %v707, 7
        %v709 = vsub.s32 %v706, %v708
        %v710 = vrot.slane %v702, %v709
        %v712 = vunpack.c.l.s4 1983009808
        %v713 = vunpack.c.0.s8 %v712
        %v714 = vlaneseq
        %v715 = vshrl.u32 %v714, 7
        %v716 = vsub.s32 %v713, %v715
        %v717 = vrot.slane %v703, %v716
        %v718 = vcombine.low %v662, %v678
        %v719 = vcombine.high %v662, %v678
        %v721 = vunpack.c.l.s4 1934713408
        %v722 = vunpack.c.0.s8 %v721
        %v723 = vlaneseq
        %v724 = vshrl.u32 %v723, 7
        %v725 = vsub.s32 %v722, %v724
        %v726 = vrot.slane %v718, %v725
        %v728 = vunpack.c.l.s4 1934713408
        %v729 = vunpack.c.0.s8 %v728
        %v730 = vlaneseq
        %v731 = vshrl.u32 %v730, 7
        %v732 = vsub.s32 %v729, %v731
        %v733 = vrot.slane %v719, %v732
        %v734 = vcombine.low %v669, %v685
        %v735 = vcombine.high %v669, %v685
        %v737 = vunpack.c.l.s4 1934713408
        %v738 = vunpack.c.0.s8 %v737
        %v739 = vlaneseq
        %v740 = vshrl.u32 %v739, 7
        %v741 = vsub.s32 %v738, %v740
        %v742 = vrot.slane %v734, %v741
        %v744 = vunpack.c.l.s4 1934713408
        %v745 = vunpack.c.0.s8 %v744
        %v746 = vlaneseq
        %v747 = vshrl.u32 %v746, 7
        %v748 = vsub.s32 %v745, %v747
        %v749 = vrot.slane %v735, %v748
        %v750 = vcombine.low %v694, %v710
        %v751 = vcombine.high %v694, %v710
        %v753 = vunpack.c.l.s4 1934713408
        %v754 = vunpack.c.0.s8 %v753
        %v755 = vlaneseq
        %v756 = vshrl.u32 %v755, 7
        %v757 = vsub.s32 %v754, %v756
        %v758 = vrot.slane %v750, %v757
        %v760 = vunpack.c.l.s4 1934713408
        %v761 = vunpack.c.0.s8 %v760
        %v762 = vlaneseq
        %v763 = vshrl.u32 %v762, 7
        %v764 = vsub.s32 %v761, %v763
        %v765 = vrot.slane %v751, %v764
        %v766 = vcombine.low %v701, %v717
        %v767 = vcombine.high %v701, %v717
        %v769 = vunpack.c.l.s4 1934713408
        %v770 = vunpack.c.0.s8 %v769
        %v771 = vlaneseq
        %v772 = vshrl.u32 %v771, 7
        %v773 = vsub.s32 %v770, %v772
        %v774 = vrot.slane %v766, %v773
        %v776 = vunpack.c.l.s4 1934713408
        %v777 = vunpack.c.0.s8 %v776
        %v778 = vlaneseq
        %v779 = vshrl.u32 %v778, 7
        %v780 = vsub.s32 %v777, %v779
        %v781 = vrot.slane %v767, %v780
        %v782 = vcombine.low %v726, %v758
        %v783 = vcombine.high %v726, %v758
        %v784 = vcombine.low %v733, %v765
        %v785 = vcombine.high %v733, %v765
        %v786 = vcombine.low %v742, %v774
        %v787 = vcombine.high %v742, %v774
        %v788 = vcombine.low %v749, %v781
        %v789 = vcombine.high %v749, %v781
        %v790 = vcombine.low %v380, %v418
        %v791 = vcombine.high %v380, %v418
        %v793 = vunpack.c.l.s4 1983009808
        %v794 = vunpack.c.0.s8 %v793
        %v795 = vlaneseq
        %v796 = vshrl.u32 %v795, 7
        %v797 = vsub.s32 %v794, %v796
        %v798 = vrot.slane %v790, %v797
        %v800 = vunpack.c.l.s4 1983009808
        %v801 = vunpack.c.0.s8 %v800
        %v802 = vlaneseq
        %v803 = vshrl.u32 %v802, 7
        %v804 = vsub.s32 %v801, %v803
        %v805 = vrot.slane %v791, %v804
        %v806 = vcombine.low %v399, %v437
        %v807 = vcombine.high %v399, %v437
        %v809 = vunpack.c.l.s4 1983009808
        %v810 = vunpack.c.0.s8 %v809
        %v811 = vlaneseq
        %v812 = vshrl.u32 %v811, 7
        %v813 = vsub.s32 %v810, %v812
        %v814 = vrot.slane %v806, %v813
        %v816 = vunpack.c.l.s4 1983009808
        %v817 = vunpack.c.0.s8 %v816
        %v818 = vlaneseq
        %v819 = vshrl.u32 %v818, 7
        %v820 = vsub.s32 %v817, %v819
        %v821 = vrot.slane %v807, %v820
        %v822 = vcombine.low %v456, %v494
        %v823 = vcombine.high %v456, %v494
        %v825 = vunpack.c.l.s4 1983009808
        %v826 = vunpack.c.0.s8 %v825
        %v827 = vlaneseq
        %v828 = vshrl.u32 %v827, 7
        %v829 = vsub.s32 %v826, %v828
        %v830 = vrot.slane %v822, %v829
        %v832 = vunpack.c.l.s4 1983009808
        %v833 = vunpack.c.0.s8 %v832
        %v834 = vlaneseq
        %v835 = vshrl.u32 %v834, 7
        %v836 = vsub.s32 %v833, %v835
        %v837 = vrot.slane %v823, %v836
        %v838 = vcombine.low %v475, %v513
        %v839 = vcombine.high %v475, %v513
        %v841 = vunpack.c.l.s4 1983009808
        %v842 = vunpack.c.0.s8 %v841
        %v843 = vlaneseq
        %v844 = vshrl.u32 %v843, 7
        %v845 = vsub.s32 %v842, %v844
        %v846 = vrot.slane %v838, %v845
        %v848 = vunpack.c.l.s4 1983009808
        %v849 = vunpack.c.0.s8 %v848
        %v850 = vlaneseq
        %v851 = vshrl.u32 %v850, 7
        %v852 = vsub.s32 %v849, %v851
        %v853 = vrot.slane %v839, %v852
        %v854 = vcombine.low %v798, %v814
        %v855 = vcombine.high %v798, %v814
        %v857 = vunpack.c.l.s4 1934713408
        %v858 = vunpack.c.0.s8 %v857
        %v859 = vlaneseq
        %v860 = vshrl.u32 %v859, 7
        %v861 = vsub.s32 %v858, %v860
        %v862 = vrot.slane %v854, %v861
        %v864 = vunpack.c.l.s4 1934713408
        %v865 = vunpack.c.0.s8 %v864
        %v866 = vlaneseq
        %v867 = vshrl.u32 %v866, 7
        %v868 = vsub.s32 %v865, %v867
        %v869 = vrot.slane %v855, %v868
        %v870 = vcombine.low %v805, %v821
        %v871 = vcombine.high %v805, %v821
        %v873 = vunpack.c.l.s4 1934713408
        %v874 = vunpack.c.0.s8 %v873
        %v875 = vlaneseq
        %v876 = vshrl.u32 %v875, 7
        %v877 = vsub.s32 %v874, %v876
        %v878 = vrot.slane %v870, %v877
        %v880 = vunpack.c.l.s4 1934713408
        %v881 = vunpack.c.0.s8 %v880
        %v882 = vlaneseq
        %v883 = vshrl.u32 %v882, 7
        %v884 = vsub.s32 %v881, %v883
        %v885 = vrot.slane %v871, %v884
        %v886 = vcombine.low %v830, %v846
        %v887 = vcombine.high %v830, %v846
        %v889 = vunpack.c.l.s4 1934713408
        %v890 = vunpack.c.0.s8 %v889
        %v891 = vlaneseq
        %v892 = vshrl.u32 %v891, 7
        %v893 = vsub.s32 %v890, %v892
        %v894 = vrot.slane %v886, %v893
        %v896 = vunpack.c.l.s4 1934713408
        %v897 = vunpack.c.0.s8 %v896
        %v898 = vlaneseq
        %v899 = vshrl.u32 %v898, 7
        %v900 = vsub.s32 %v897, %v899
        %v901 = vrot.slane %v887, %v900
        %v902 = vcombine.low %v837, %v853
        %v903 = vcombine.high %v837, %v853
        %v905 = vunpack.c.l.s4 1934713408
        %v906 = vunpack.c.0.s8 %v905
        %v907 = vlaneseq
        %v908 = vshrl.u32 %v907, 7
        %v909 = vsub.s32 %v906, %v908
        %v910 = vrot.slane %v902, %v909
        %v912 = vunpack.c.l.s4 1934713408
        %v913 = vunpack.c.0.s8 %v912
        %v914 = vlaneseq
        %v915 = vshrl.u32 %v914, 7
        %v916 = vsub.s32 %v913, %v915
        %v917 = vrot.slane %v903, %v916
        %v918 = vcombine.low %v862, %v894
        %v919 = vcombine.high %v862, %v894
        %v920 = vcombine.low %v869, %v901
        %v921 = vcombine.high %v869, %v901
        %v922 = vcombine.low %v878, %v910
        %v923 = vcombine.high %v878, %v910
        %v924 = vcombine.low %v885, %v917
        %v925 = vcombine.high %v885, %v917
        %v926 = vcombine.low %v384, %v422
        %v927 = vcombine.high %v384, %v422
        %v929 = vunpack.c.l.s4 1983009808
        %v930 = vunpack.c.0.s8 %v929
        %v931 = vlaneseq
        %v932 = vshrl.u32 %v931, 7
        %v933 = vsub.s32 %v930, %v932
        %v934 = vrot.slane %v926, %v933
        %v936 = vunpack.c.l.s4 1983009808
        %v937 = vunpack.c.0.s8 %v936
        %v938 = vlaneseq
        %v939 = vshrl.u32 %v938, 7
        %v940 = vsub.s32 %v937, %v939
        %v941 = vrot.slane %v927, %v940
        %v942 = vcombine.low %v403, %v441
        %v943 = vcombine.high %v403, %v441
        %v945 = vunpack.c.l.s4 1983009808
        %v946 = vunpack.c.0.s8 %v945
        %v947 = vlaneseq
        %v948 = vshrl.u32 %v947, 7
        %v949 = vsub.s32 %v946, %v948
        %v950 = vrot.slane %v942, %v949
        %v952 = vunpack.c.l.s4 1983009808
        %v953 = vunpack.c.0.s8 %v952
        %v954 = vlaneseq
        %v955 = vshrl.u32 %v954, 7
        %v956 = vsub.s32 %v953, %v955
        %v957 = vrot.slane %v943, %v956
        %v958 = vcombine.low %v460, %v498
        %v959 = vcombine.high %v460, %v498
        %v961 = vunpack.c.l.s4 1983009808
        %v962 = vunpack.c.0.s8 %v961
        %v963 = vlaneseq
        %v964 = vshrl.u32 %v963, 7
        %v965 = vsub.s32 %v962, %v964
        %v966 = vrot.slane %v958, %v965
        %v968 = vunpack.c.l.s4 1983009808
        %v969 = vunpack.c.0.s8 %v968
        %v970 = vlaneseq
        %v971 = vshrl.u32 %v970, 7
        %v972 = vsub.s32 %v969, %v971
        %v973 = vrot.slane %v959, %v972
        %v974 = vcombine.low %v479, %v517
        %v975 = vcombine.high %v479, %v517
        %v977 = vunpack.c.l.s4 1983009808
        %v978 = vunpack.c.0.s8 %v977
        %v979 = vlaneseq
        %v980 = vshrl.u32 %v979, 7
        %v981 = vsub.s32 %v978, %v980
        %v982 = vrot.slane %v974, %v981
        %v984 = vunpack.c.l.s4 1983009808
        %v985 = vunpack.c.0.s8 %v984
        %v986 = vlaneseq
        %v987 = vshrl.u32 %v986, 7
        %v988 = vsub.s32 %v985, %v987
        %v989 = vrot.slane %v975, %v988
        %v990 = vcombine.low %v934, %v950
        %v991 = vcombine.high %v934, %v950
        %v993 = vunpack.c.l.s4 1934713408
        %v994 = vunpack.c.0.s8 %v993
        %v995 = vlaneseq
        %v996 = vshrl.u32 %v995, 7
        %v997 = vsub.s32 %v994, %v996
        %v998 = vrot.slane %v990, %v997
        %v1000 = vunpack.c.l.s4 1934713408
        %v1001 = vunpack.c.0.s8 %v1000
        %v1002 = vlaneseq
        %v1003 = vshrl.u32 %v1002, 7
        %v1004 = vsub.s32 %v1001, %v1003
        %v1005 = vrot.slane %v991, %v1004
        %v1006 = vcombine.low %v941, %v957
        %v1007 = vcombine.high %v941, %v957
        %v1009 = vunpack.c.l.s4 1934713408
        %v1010 = vunpack.c.0.s8 %v1009
        %v1011 = vlaneseq
        %v1012 = vshrl.u32 %v1011, 7
        %v1013 = vsub.s32 %v1010, %v1012
        %v1014 = vrot.slane %v1006, %v1013
        %v1016 = vunpack.c.l.s4 1934713408
        %v1017 = vunpack.c.0.s8 %v1016
        %v1018 = vlaneseq
        %v1019 = vshrl.u32 %v1018, 7
        %v1020 = vsub.s32 %v1017, %v1019
        %v1021 = vrot.slane %v1007, %v1020
        %v1022 = vcombine.low %v966, %v982
        %v1023 = vcombine.high %v966, %v982
        %v1025 = vunpack.c.l.s4 1934713408
        %v1026 = vunpack.c.0.s8 %v1025
        %v1027 = vlaneseq
        %v1028 = vshrl.u32 %v1027, 7
        %v1029 = vsub.s32 %v1026, %v1028
        %v1030 = vrot.slane %v1022, %v1029
        %v1032 = vunpack.c.l.s4 1934713408
        %v1033 = vunpack.c.0.s8 %v1032
        %v1034 = vlaneseq
        %v1035 = vshrl.u32 %v1034, 7
        %v1036 = vsub.s32 %v1033, %v1035
        %v1037 = vrot.slane %v1023, %v1036
        %v1038 = vcombine.low %v973, %v989
        %v1039 = vcombine.high %v973, %v989
        %v1041 = vunpack.c.l.s4 1934713408
        %v1042 = vunpack.c.0.s8 %v1041
        %v1043 = vlaneseq
        %v1044 = vshrl.u32 %v1043, 7
        %v1045 = vsub.s32 %v1042, %v1044
        %v1046 = vrot.slane %v1038, %v1045
        %v1048 = vunpack.c.l.s4 1934713408
        %v1049 = vunpack.c.0.s8 %v1048
        %v1050 = vlaneseq
        %v1051 = vshrl.u32 %v1050, 7
        %v1052 = vsub.s32 %v1049, %v1051
        %v1053 = vrot.slane %v1039, %v1052
        %v1054 = vcombine.low %v998, %v1030
        %v1055 = vcombine.high %v998, %v1030
        %v1056 = vcombine.low %v1005, %v1037
        %v1057 = vcombine.high %v1005, %v1037
        %v1058 = vcombine.low %v1014, %v1046
        %v1059 = vcombine.high %v1014, %v1046
        %v1060 = vcombine.low %v1021, %v1053
        %v1061 = vcombine.high %v1021, %v1053
        %1063 = vrot.lane.b32.xlu0 %v647, 32
        %v1064 = vpop.permute.xlu0 %1063
        %1067 = vrot.lane.b32.xlu0 %v648, 64
        %v1068 = vpop.permute.xlu0 %1067
        %1071 = vrot.lane.b32.xlu0 %v649, 96
        %v1072 = vpop.permute.xlu0 %1071
        %1075 = vrot.lane.b32.xlu0 %v651, 32
        %v1076 = vpop.permute.xlu0 %1075
        %1079 = vrot.lane.b32.xlu0 %v652, 64
        %v1080 = vpop.permute.xlu0 %1079
        %1083 = vrot.lane.b32.xlu0 %v653, 96
        %v1084 = vpop.permute.xlu0 %1083
        %1087 = vrot.lane.b32.xlu0 %v783, 32
        %v1088 = vpop.permute.xlu0 %1087
        %1091 = vrot.lane.b32.xlu0 %v784, 64
        %v1092 = vpop.permute.xlu0 %1091
        %1095 = vrot.lane.b32.xlu0 %v785, 96
        %v1096 = vpop.permute.xlu0 %1095
        %1099 = vrot.lane.b32.xlu0 %v787, 32
        %v1100 = vpop.permute.xlu0 %1099
        %1103 = vrot.lane.b32.xlu0 %v788, 64
        %v1104 = vpop.permute.xlu0 %1103
        %1107 = vrot.lane.b32.xlu0 %v789, 96
        %v1108 = vpop.permute.xlu0 %1107
        %1111 = vrot.lane.b32.xlu0 %v919, 32
        %v1112 = vpop.permute.xlu0 %1111
        %1115 = vrot.lane.b32.xlu0 %v920, 64
        %v1116 = vpop.permute.xlu0 %1115
        %1119 = vrot.lane.b32.xlu0 %v921, 96
        %v1120 = vpop.permute.xlu0 %1119
        %1123 = vrot.lane.b32.xlu0 %v923, 32
        %v1124 = vpop.permute.xlu0 %1123
        %1127 = vrot.lane.b32.xlu0 %v924, 64
        %v1128 = vpop.permute.xlu0 %1127
        %1131 = vrot.lane.b32.xlu0 %v925, 96
        %v1132 = vpop.permute.xlu0 %1131
        %1135 = vrot.lane.b32.xlu0 %v1055, 32
        %v1136 = vpop.permute.xlu0 %1135
        %1139 = vrot.lane.b32.xlu0 %v1056, 64
        %v1140 = vpop.permute.xlu0 %1139
        %1143 = vrot.lane.b32.xlu0 %v1057, 96
        %v1144 = vpop.permute.xlu0 %1143
        %1147 = vrot.lane.b32.xlu0 %v1059, 32
        %v1148 = vpop.permute.xlu0 %1147
        %1151 = vrot.lane.b32.xlu0 %v1060, 64
        %v1152 = vpop.permute.xlu0 %1151
        %1155 = vrot.lane.b32.xlu0 %v1061, 96
        %v1156 = vpop.permute.xlu0 %1155
        %v1158 = vsel %vm266, %v646, %v1064
        %vm1159 = vcmask 523264
        %v1160 = vsel %vm1159, %v1158, %v1068
        %vm1161 = vcmask 785408
        %v1162 = vsel %vm1161, %v1160, %v1072
        %v1163 = vsel %vm266, %v650, %v1076
        %v1164 = vsel %vm1159, %v1163, %v1080
        %v1165 = vsel %vm1161, %v1164, %v1084
        %v1166 = vsel %vm266, %v782, %v1088
        %v1167 = vsel %vm1159, %v1166, %v1092
        %v1168 = vsel %vm1161, %v1167, %v1096
        %v1169 = vsel %vm266, %v786, %v1100
        %v1170 = vsel %vm1159, %v1169, %v1104
        %v1171 = vsel %vm1161, %v1170, %v1108
        %v1172 = vsel %vm266, %v918, %v1112
        %v1173 = vsel %vm1159, %v1172, %v1116
        %v1174 = vsel %vm1161, %v1173, %v1120
        %v1175 = vsel %vm266, %v922, %v1124
        %v1176 = vsel %vm1159, %v1175, %v1128
        %v1177 = vsel %vm1161, %v1176, %v1132
        %v1178 = vsel %vm266, %v1054, %v1136
        %v1179 = vsel %vm1159, %v1178, %v1140
        %v1180 = vsel %vm1161, %v1179, %v1144
        %v1181 = vsel %vm266, %v1058, %v1148
        %v1182 = vsel %vm1159, %v1181, %v1152
        %v1183 = vsel %vm1161, %v1182, %v1156
        %1185 = vrot.lane.b32.xlu0 %v361, 32
        %v1186 = vpop.permute.xlu0 %1185
        %1188 = vrot.lane.b32.xlu0 %v361, 64
        %v1189 = vpop.permute.xlu0 %1188
        %1191 = vrot.lane.b32.xlu0 %v361, 96
        %v1192 = vpop.permute.xlu0 %1191
        %v1194 = vsel %vm266, %v361, %v1186
        %v1195 = vsel %vm1159, %v1194, %v1189
        %v1196 = vsel %vm1161, %v1195, %v1192
        %v1197 = vmul.f32 %v1162, %v1196
        %v1198 = vmul.f32 %v1165, %v1196
        %v1199 = vmul.f32 %v1168, %v1196
        %v1200 = vmul.f32 %v1171, %v1196
        %v1201 = vmul.f32 %v1174, %v1196
        %v1202 = vmul.f32 %v1177, %v1196
        %v1203 = vmul.f32 %v1180, %v1196
        %v1204 = vmul.f32 %v1183, %v1196
        %v1205 = vpack.c.bf16 %v1197, %v1197
        %v1206 = vpack.c.bf16 %v1198, %v1198
        %v1207 = vpack.c.bf16 %v1199, %v1199
        %v1208 = vpack.c.bf16 %v1200, %v1200
        %v1209 = vpack.c.bf16 %v1201, %v1201
        %v1210 = vpack.c.bf16 %v1202, %v1202
        %v1211 = vpack.c.bf16 %v1203, %v1203
        %v1212 = vpack.c.bf16 %v1204, %v1204
        %v1213 = vld [vmem:[%s3] sm:$0xf]
        %v1214 = vld [vmem:[%s3 + $0x4] sm:$0xf]
        %v1215 = vld [vmem:[%s3 + $0x8] sm:$0xf]
        %v1216 = vld [vmem:[%s3 + $0xc] sm:$0xf]
        %v1217 = vld [vmem:[%s3 + $0x10] sm:$0xf]
        %v1218 = vld [vmem:[%s3 + $0x14] sm:$0xf]
        %v1219 = vld [vmem:[%s3 + $0x18] sm:$0xf]
        %v1220 = vld [vmem:[%s3 + $0x1c] sm:$0xf]
        %v1221 = vld [vmem:[%s3 + $0x20] sm:$0xf]
        %v1222 = vld [vmem:[%s3 + $0x24] sm:$0xf]
        %v1223 = vld [vmem:[%s3 + $0x28] sm:$0xf]
        %v1224 = vld [vmem:[%s3 + $0x2c] sm:$0xf]
        %v1225 = vld [vmem:[%s3 + $0x30] sm:$0xf]
        %v1226 = vld [vmem:[%s3 + $0x34] sm:$0xf]
        %v1227 = vld [vmem:[%s3 + $0x38] sm:$0xf]
        %v1228 = vld [vmem:[%s3 + $0x3c] sm:$0xf]
        %v1229 = vld [vmem:[%s3 + $0x40] sm:$0xf]
        %v1230 = vld [vmem:[%s3 + $0x44] sm:$0xf]
        %v1231 = vld [vmem:[%s3 + $0x48] sm:$0xf]
        %v1232 = vld [vmem:[%s3 + $0x4c] sm:$0xf]
        %v1233 = vld [vmem:[%s3 + $0x50] sm:$0xf]
        %v1234 = vld [vmem:[%s3 + $0x54] sm:$0xf]
        %v1235 = vld [vmem:[%s3 + $0x58] sm:$0xf]
        %v1236 = vld [vmem:[%s3 + $0x5c] sm:$0xf]
        %v1237 = vld [vmem:[%s3 + $0x60] sm:$0xf]
        %v1238 = vld [vmem:[%s3 + $0x64] sm:$0xf]
        %v1239 = vld [vmem:[%s3 + $0x68] sm:$0xf]
        %v1240 = vld [vmem:[%s3 + $0x6c] sm:$0xf]
        %v1241 = vld [vmem:[%s3 + $0x70] sm:$0xf]
        %v1242 = vld [vmem:[%s3 + $0x74] sm:$0xf]
        %v1243 = vld [vmem:[%s3 + $0x78] sm:$0xf]
        %v1244 = vld [vmem:[%s3 + $0x7c] sm:$0xf]
        %v1245 = vld [vmem:[%s3 + $0x80] sm:$0xf]
        %v1246 = vld [vmem:[%s3 + $0x84] sm:$0xf]
        %v1247 = vld [vmem:[%s3 + $0x88] sm:$0xf]
        %v1248 = vld [vmem:[%s3 + $0x8c] sm:$0xf]
        %v1249 = vld [vmem:[%s3 + $0x90] sm:$0xf]
        %v1250 = vld [vmem:[%s3 + $0x94] sm:$0xf]
        %v1251 = vld [vmem:[%s3 + $0x98] sm:$0xf]
        %v1252 = vld [vmem:[%s3 + $0x9c] sm:$0xf]
        %v1253 = vld [vmem:[%s3 + $0xa0] sm:$0xf]
        %v1254 = vld [vmem:[%s3 + $0xa4] sm:$0xf]
        %v1255 = vld [vmem:[%s3 + $0xa8] sm:$0xf]
        %v1256 = vld [vmem:[%s3 + $0xac] sm:$0xf]
        %v1257 = vld [vmem:[%s3 + $0xb0] sm:$0xf]
        %v1258 = vld [vmem:[%s3 + $0xb4] sm:$0xf]
        %v1259 = vld [vmem:[%s3 + $0xb8] sm:$0xf]
        %v1260 = vld [vmem:[%s3 + $0xbc] sm:$0xf]
        %v1261 = vld [vmem:[%s3 + $0xc0] sm:$0xf]
        %v1262 = vld [vmem:[%s3 + $0xc4] sm:$0xf]
        %v1263 = vld [vmem:[%s3 + $0xc8] sm:$0xf]
        %v1264 = vld [vmem:[%s3 + $0xcc] sm:$0xf]
        %v1265 = vld [vmem:[%s3 + $0xd0] sm:$0xf]
        %v1266 = vld [vmem:[%s3 + $0xd4] sm:$0xf]
        %v1267 = vld [vmem:[%s3 + $0xd8] sm:$0xf]
        %v1268 = vld [vmem:[%s3 + $0xdc] sm:$0xf]
        %v1269 = vld [vmem:[%s3 + $0xe0] sm:$0xf]
        %v1270 = vld [vmem:[%s3 + $0xe4] sm:$0xf]
        %v1271 = vld [vmem:[%s3 + $0xe8] sm:$0xf]
        %v1272 = vld [vmem:[%s3 + $0xec] sm:$0xf]
        %v1273 = vld [vmem:[%s3 + $0xf0] sm:$0xf]
        %v1274 = vld [vmem:[%s3 + $0xf4] sm:$0xf]
        %v1275 = vld [vmem:[%s3 + $0xf8] sm:$0xf]
        %v1276 = vld [vmem:[%s3 + $0xfc] sm:$0xf]
        %v1277 = vld [vmem:[%s3 + $0x100] sm:$0xf]
        %v1278 = vld [vmem:[%s3 + $0x104] sm:$0xf]
        %v1279 = vld [vmem:[%s3 + $0x108] sm:$0xf]
        %v1280 = vld [vmem:[%s3 + $0x10c] sm:$0xf]
        %v1281 = vld [vmem:[%s3 + $0x110] sm:$0xf]
        %v1282 = vld [vmem:[%s3 + $0x114] sm:$0xf]
        %v1283 = vld [vmem:[%s3 + $0x118] sm:$0xf]
        %v1284 = vld [vmem:[%s3 + $0x11c] sm:$0xf]
        %v1285 = vld [vmem:[%s3 + $0x120] sm:$0xf]
        %v1286 = vld [vmem:[%s3 + $0x124] sm:$0xf]
        %v1287 = vld [vmem:[%s3 + $0x128] sm:$0xf]
        %v1288 = vld [vmem:[%s3 + $0x12c] sm:$0xf]
        %v1289 = vld [vmem:[%s3 + $0x130] sm:$0xf]
        %v1290 = vld [vmem:[%s3 + $0x134] sm:$0xf]
        %v1291 = vld [vmem:[%s3 + $0x138] sm:$0xf]
        %v1292 = vld [vmem:[%s3 + $0x13c] sm:$0xf]
        %v1293 = vld [vmem:[%s3 + $0x140] sm:$0xf]
        %v1294 = vld [vmem:[%s3 + $0x144] sm:$0xf]
        %v1295 = vld [vmem:[%s3 + $0x148] sm:$0xf]
        %v1296 = vld [vmem:[%s3 + $0x14c] sm:$0xf]
        %v1297 = vld [vmem:[%s3 + $0x150] sm:$0xf]
        %v1298 = vld [vmem:[%s3 + $0x154] sm:$0xf]
        %v1299 = vld [vmem:[%s3 + $0x158] sm:$0xf]
        %v1300 = vld [vmem:[%s3 + $0x15c] sm:$0xf]
        %v1301 = vld [vmem:[%s3 + $0x160] sm:$0xf]
        %v1302 = vld [vmem:[%s3 + $0x164] sm:$0xf]
        %v1303 = vld [vmem:[%s3 + $0x168] sm:$0xf]
        %v1304 = vld [vmem:[%s3 + $0x16c] sm:$0xf]
        %v1305 = vld [vmem:[%s3 + $0x170] sm:$0xf]
        %v1306 = vld [vmem:[%s3 + $0x174] sm:$0xf]
        %v1307 = vld [vmem:[%s3 + $0x178] sm:$0xf]
        %v1308 = vld [vmem:[%s3 + $0x17c] sm:$0xf]
        %v1309 = vld [vmem:[%s3 + $0x180] sm:$0xf]
        %v1310 = vld [vmem:[%s3 + $0x184] sm:$0xf]
        %v1311 = vld [vmem:[%s3 + $0x188] sm:$0xf]
        %v1312 = vld [vmem:[%s3 + $0x18c] sm:$0xf]
        %v1313 = vld [vmem:[%s3 + $0x190] sm:$0xf]
        %v1314 = vld [vmem:[%s3 + $0x194] sm:$0xf]
        %v1315 = vld [vmem:[%s3 + $0x198] sm:$0xf]
        %v1316 = vld [vmem:[%s3 + $0x19c] sm:$0xf]
        %v1317 = vld [vmem:[%s3 + $0x1a0] sm:$0xf]
        %v1318 = vld [vmem:[%s3 + $0x1a4] sm:$0xf]
        %v1319 = vld [vmem:[%s3 + $0x1a8] sm:$0xf]
        %v1320 = vld [vmem:[%s3 + $0x1ac] sm:$0xf]
        %v1321 = vld [vmem:[%s3 + $0x1b0] sm:$0xf]
        %v1322 = vld [vmem:[%s3 + $0x1b4] sm:$0xf]
        %v1323 = vld [vmem:[%s3 + $0x1b8] sm:$0xf]
        %v1324 = vld [vmem:[%s3 + $0x1bc] sm:$0xf]
        %v1325 = vld [vmem:[%s3 + $0x1c0] sm:$0xf]
        %v1326 = vld [vmem:[%s3 + $0x1c4] sm:$0xf]
        %v1327 = vld [vmem:[%s3 + $0x1c8] sm:$0xf]
        %v1328 = vld [vmem:[%s3 + $0x1cc] sm:$0xf]
        %v1329 = vld [vmem:[%s3 + $0x1d0] sm:$0xf]
        %v1330 = vld [vmem:[%s3 + $0x1d4] sm:$0xf]
        %v1331 = vld [vmem:[%s3 + $0x1d8] sm:$0xf]
        %v1332 = vld [vmem:[%s3 + $0x1dc] sm:$0xf]
        %v1333 = vld [vmem:[%s3 + $0x1e0] sm:$0xf]
        %v1334 = vld [vmem:[%s3 + $0x1e4] sm:$0xf]
        %v1335 = vld [vmem:[%s3 + $0x1e8] sm:$0xf]
        %v1336 = vld [vmem:[%s3 + $0x1ec] sm:$0xf]
        %v1337 = vld [vmem:[%s3 + $0x1f0] sm:$0xf]
        %v1338 = vld [vmem:[%s3 + $0x1f4] sm:$0xf]
        %v1339 = vld [vmem:[%s3 + $0x1f8] sm:$0xf]
        %v1340 = vld [vmem:[%s3 + $0x1fc] sm:$0xf]
        %v1469 = vunpack.c.l.b16 %v1213
        %v1470 = vunpack.c.l.b16 %v1214
        %v1471 = vunpack.c.l.b16 %v1215
        %v1472 = vunpack.c.l.b16 %v1216
        %v1473 = vunpack.c.l.b16 %v1217
        %v1474 = vunpack.c.l.b16 %v1218
        %v1475 = vunpack.c.l.b16 %v1219
        %v1476 = vunpack.c.l.b16 %v1220
        %v1477 = vunpack.c.l.b16 %v1221
        %v1478 = vunpack.c.l.b16 %v1222
        %v1479 = vunpack.c.l.b16 %v1223
        %v1480 = vunpack.c.l.b16 %v1224
        %v1481 = vunpack.c.l.b16 %v1225
        %v1482 = vunpack.c.l.b16 %v1226
        %v1483 = vunpack.c.l.b16 %v1227
        %v1484 = vunpack.c.l.b16 %v1228
        %v1485 = vunpack.c.l.b16 %v1229
        %v1486 = vunpack.c.l.b16 %v1230
        %v1487 = vunpack.c.l.b16 %v1231
        %v1488 = vunpack.c.l.b16 %v1232
        %v1489 = vunpack.c.l.b16 %v1233
        %v1490 = vunpack.c.l.b16 %v1234
        %v1491 = vunpack.c.l.b16 %v1235
        %v1492 = vunpack.c.l.b16 %v1236
        %v1493 = vunpack.c.l.b16 %v1237
        %v1494 = vunpack.c.l.b16 %v1238
        %v1495 = vunpack.c.l.b16 %v1239
        %v1496 = vunpack.c.l.b16 %v1240
        %v1497 = vunpack.c.l.b16 %v1241
        %v1498 = vunpack.c.l.b16 %v1242
        %v1499 = vunpack.c.l.b16 %v1243
        %v1500 = vunpack.c.l.b16 %v1244
        %v1501 = vunpack.c.l.b16 %v1245
        %v1502 = vunpack.c.l.b16 %v1246
        %v1503 = vunpack.c.l.b16 %v1247
        %v1504 = vunpack.c.l.b16 %v1248
        %v1505 = vunpack.c.l.b16 %v1249
        %v1506 = vunpack.c.l.b16 %v1250
        %v1507 = vunpack.c.l.b16 %v1251
        %v1508 = vunpack.c.l.b16 %v1252
        %v1509 = vunpack.c.l.b16 %v1253
        %v1510 = vunpack.c.l.b16 %v1254
        %v1511 = vunpack.c.l.b16 %v1255
        %v1512 = vunpack.c.l.b16 %v1256
        %v1513 = vunpack.c.l.b16 %v1257
        %v1514 = vunpack.c.l.b16 %v1258
        %v1515 = vunpack.c.l.b16 %v1259
        %v1516 = vunpack.c.l.b16 %v1260
        %v1517 = vunpack.c.l.b16 %v1261
        %v1518 = vunpack.c.l.b16 %v1262
        %v1519 = vunpack.c.l.b16 %v1263
        %v1520 = vunpack.c.l.b16 %v1264
        %v1521 = vunpack.c.l.b16 %v1265
        %v1522 = vunpack.c.l.b16 %v1266
        %v1523 = vunpack.c.l.b16 %v1267
        %v1524 = vunpack.c.l.b16 %v1268
        %v1525 = vunpack.c.l.b16 %v1269
        %v1526 = vunpack.c.l.b16 %v1270
        %v1527 = vunpack.c.l.b16 %v1271
        %v1528 = vunpack.c.l.b16 %v1272
        %v1529 = vunpack.c.l.b16 %v1273
        %v1530 = vunpack.c.l.b16 %v1274
        %v1531 = vunpack.c.l.b16 %v1275
        %v1532 = vunpack.c.l.b16 %v1276
        %v1533 = vunpack.c.l.b16 %v1277
        %v1534 = vunpack.c.l.b16 %v1278
        %v1535 = vunpack.c.l.b16 %v1279
        %v1536 = vunpack.c.l.b16 %v1280
        %v1537 = vunpack.c.l.b16 %v1281
        %v1538 = vunpack.c.l.b16 %v1282
        %v1539 = vunpack.c.l.b16 %v1283
        %v1540 = vunpack.c.l.b16 %v1284
        %v1541 = vunpack.c.l.b16 %v1285
        %v1542 = vunpack.c.l.b16 %v1286
        %v1543 = vunpack.c.l.b16 %v1287
        %v1544 = vunpack.c.l.b16 %v1288
        %v1545 = vunpack.c.l.b16 %v1289
        %v1546 = vunpack.c.l.b16 %v1290
        %v1547 = vunpack.c.l.b16 %v1291
        %v1548 = vunpack.c.l.b16 %v1292
        %v1549 = vunpack.c.l.b16 %v1293
        %v1550 = vunpack.c.l.b16 %v1294
        %v1551 = vunpack.c.l.b16 %v1295
        %v1552 = vunpack.c.l.b16 %v1296
        %v1553 = vunpack.c.l.b16 %v1297
        %v1554 = vunpack.c.l.b16 %v1298
        %v1555 = vunpack.c.l.b16 %v1299
        %v1556 = vunpack.c.l.b16 %v1300
        %v1557 = vunpack.c.l.b16 %v1301
        %v1558 = vunpack.c.l.b16 %v1302
        %v1559 = vunpack.c.l.b16 %v1303
        %v1560 = vunpack.c.l.b16 %v1304
        %v1561 = vunpack.c.l.b16 %v1305
        %v1562 = vunpack.c.l.b16 %v1306
        %v1563 = vunpack.c.l.b16 %v1307
        %v1564 = vunpack.c.l.b16 %v1308
        %v1565 = vunpack.c.l.b16 %v1309
        %v1566 = vunpack.c.l.b16 %v1310
        %v1567 = vunpack.c.l.b16 %v1311
        %v1568 = vunpack.c.l.b16 %v1312
        %v1569 = vunpack.c.l.b16 %v1313
        %v1570 = vunpack.c.l.b16 %v1314
        %v1571 = vunpack.c.l.b16 %v1315
        %v1572 = vunpack.c.l.b16 %v1316
        %v1573 = vunpack.c.l.b16 %v1317
        %v1574 = vunpack.c.l.b16 %v1318
        %v1575 = vunpack.c.l.b16 %v1319
        %v1576 = vunpack.c.l.b16 %v1320
        %v1577 = vunpack.c.l.b16 %v1321
        %v1578 = vunpack.c.l.b16 %v1322
        %v1579 = vunpack.c.l.b16 %v1323
        %v1580 = vunpack.c.l.b16 %v1324
        %v1581 = vunpack.c.l.b16 %v1325
        %v1582 = vunpack.c.l.b16 %v1326
        %v1583 = vunpack.c.l.b16 %v1327
        %v1584 = vunpack.c.l.b16 %v1328
        %v1585 = vunpack.c.l.b16 %v1329
        %v1586 = vunpack.c.l.b16 %v1330
        %v1587 = vunpack.c.l.b16 %v1331
        %v1588 = vunpack.c.l.b16 %v1332
        %v1589 = vunpack.c.l.b16 %v1333
        %v1590 = vunpack.c.l.b16 %v1334
        %v1591 = vunpack.c.l.b16 %v1335
        %v1592 = vunpack.c.l.b16 %v1336
        %v1593 = vunpack.c.l.b16 %v1337
        %v1594 = vunpack.c.l.b16 %v1338
        %v1595 = vunpack.c.l.b16 %v1339
        %v1596 = vunpack.c.l.b16 %v1340
        %v1597 = vpack.c.b16 %v1470, %v1469
        %v1598 = vpack.c.b16 %v1472, %v1471
        %v1599 = vpack.c.b16 %v1474, %v1473
        %v1600 = vpack.c.b16 %v1476, %v1475
        %v1601 = vpack.c.b16 %v1478, %v1477
        %v1602 = vpack.c.b16 %v1480, %v1479
        %v1603 = vpack.c.b16 %v1482, %v1481
        %v1604 = vpack.c.b16 %v1484, %v1483
        %v1605 = vpack.c.b16 %v1486, %v1485
        %v1606 = vpack.c.b16 %v1488, %v1487
        %v1607 = vpack.c.b16 %v1490, %v1489
        %v1608 = vpack.c.b16 %v1492, %v1491
        %v1609 = vpack.c.b16 %v1494, %v1493
        %v1610 = vpack.c.b16 %v1496, %v1495
        %v1611 = vpack.c.b16 %v1498, %v1497
        %v1612 = vpack.c.b16 %v1500, %v1499
        %v1613 = vpack.c.b16 %v1502, %v1501
        %v1614 = vpack.c.b16 %v1504, %v1503
        %v1615 = vpack.c.b16 %v1506, %v1505
        %v1616 = vpack.c.b16 %v1508, %v1507
        %v1617 = vpack.c.b16 %v1510, %v1509
        %v1618 = vpack.c.b16 %v1512, %v1511
        %v1619 = vpack.c.b16 %v1514, %v1513
        %v1620 = vpack.c.b16 %v1516, %v1515
        %v1621 = vpack.c.b16 %v1518, %v1517
        %v1622 = vpack.c.b16 %v1520, %v1519
        %v1623 = vpack.c.b16 %v1522, %v1521
        %v1624 = vpack.c.b16 %v1524, %v1523
        %v1625 = vpack.c.b16 %v1526, %v1525
        %v1626 = vpack.c.b16 %v1528, %v1527
        %v1627 = vpack.c.b16 %v1530, %v1529
        %v1628 = vpack.c.b16 %v1532, %v1531
        %v1629 = vpack.c.b16 %v1534, %v1533
        %v1630 = vpack.c.b16 %v1536, %v1535
        %v1631 = vpack.c.b16 %v1538, %v1537
        %v1632 = vpack.c.b16 %v1540, %v1539
        %v1633 = vpack.c.b16 %v1542, %v1541
        %v1634 = vpack.c.b16 %v1544, %v1543
        %v1635 = vpack.c.b16 %v1546, %v1545
        %v1636 = vpack.c.b16 %v1548, %v1547
        %v1637 = vpack.c.b16 %v1550, %v1549
        %v1638 = vpack.c.b16 %v1552, %v1551
        %v1639 = vpack.c.b16 %v1554, %v1553
        %v1640 = vpack.c.b16 %v1556, %v1555
        %v1641 = vpack.c.b16 %v1558, %v1557
        %v1642 = vpack.c.b16 %v1560, %v1559
        %v1643 = vpack.c.b16 %v1562, %v1561
        %v1644 = vpack.c.b16 %v1564, %v1563
        %v1645 = vpack.c.b16 %v1566, %v1565
        %v1646 = vpack.c.b16 %v1568, %v1567
        %v1647 = vpack.c.b16 %v1570, %v1569
        %v1648 = vpack.c.b16 %v1572, %v1571
        %v1649 = vpack.c.b16 %v1574, %v1573
        %v1650 = vpack.c.b16 %v1576, %v1575
        %v1651 = vpack.c.b16 %v1578, %v1577
        %v1652 = vpack.c.b16 %v1580, %v1579
        %v1653 = vpack.c.b16 %v1582, %v1581
        %v1654 = vpack.c.b16 %v1584, %v1583
        %v1655 = vpack.c.b16 %v1586, %v1585
        %v1656 = vpack.c.b16 %v1588, %v1587
        %v1657 = vpack.c.b16 %v1590, %v1589
        %v1658 = vpack.c.b16 %v1592, %v1591
        %v1659 = vpack.c.b16 %v1594, %v1593
        %v1660 = vpack.c.b16 %v1596, %v1595
        %1725 = vmatprep.subr.bf16.mxu0 0
        %1726 = vmatpush1.bf16.msra.mxu0 %v1597
        %1727 = vmatprep.subr.bf16.mxu0 0
        %1728 = vmatpush1.bf16.msra.mxu0 %v1598
        %1729 = vmatprep.subr.bf16.mxu0 0
        %1730 = vmatpush1.bf16.msra.mxu0 %v1599
        %1731 = vmatprep.subr.bf16.mxu0 0
        %1732 = vmatpush1.bf16.msra.mxu0 %v1600
        %1733 = vmatprep.subr.bf16.mxu0 0
        %1734 = vmatpush1.bf16.msra.mxu0 %v1601
        %1735 = vmatprep.subr.bf16.mxu0 0
        %1736 = vmatpush1.bf16.msra.mxu0 %v1602
        %1737 = vmatprep.subr.bf16.mxu0 0
        %1738 = vmatpush1.bf16.msra.mxu0 %v1603
        %1739 = vmatprep.subr.bf16.mxu0 0
        %1740 = vmatpush1.bf16.msra.mxu0 %v1604
        %1741 = vmatprep.subr.bf16.mxu0 0
        %1742 = vmatpush1.bf16.msra.mxu0 %v1605
        %1743 = vmatprep.subr.bf16.mxu0 0
        %1744 = vmatpush1.bf16.msra.mxu0 %v1606
        %1745 = vmatprep.subr.bf16.mxu0 0
        %1746 = vmatpush1.bf16.msra.mxu0 %v1607
        %1747 = vmatprep.subr.bf16.mxu0 0
        %1748 = vmatpush1.bf16.msra.mxu0 %v1608
        %1749 = vmatprep.subr.bf16.mxu0 0
        %1750 = vmatpush1.bf16.msra.mxu0 %v1609
        %1751 = vmatprep.subr.bf16.mxu0 0
        %1752 = vmatpush1.bf16.msra.mxu0 %v1610
        %1753 = vmatprep.subr.bf16.mxu0 0
        %1754 = vmatpush1.bf16.msra.mxu0 %v1611
        %1755 = vmatprep.subr.bf16.mxu0 0
        %1756 = vmatpush1.bf16.msra.mxu0 %v1612
        %1757 = vmatprep.mubr.bf16.mxu0 %v1206
        %1758 = vmatmul.mubr.bf16.gmra.mrb[0].mxu0 %v1205
        %v1759 = vpop.f32.mrb[0].mxu0
        %v1760 = vadd.f32 0.0, %v1759
        %v1761 = vpop.f32.mrb[0].mxu0
        %v1762 = vpop.f32.mrb[0].mxu0
        %v1763 = vpop.f32.mrb[0].mxu0
        %1764 = vdwg.mxu0
        %1765 = vmatprep.subr.bf16.mxu0 0
        %1766 = vmatpush1.bf16.msra.mxu0 %v1613
        %1767 = vmatprep.subr.bf16.mxu0 0
        %1768 = vmatpush1.bf16.msra.mxu0 %v1614
        %1769 = vmatprep.subr.bf16.mxu0 0
        %1770 = vmatpush1.bf16.msra.mxu0 %v1615
        %1771 = vmatprep.subr.bf16.mxu0 0
        %1772 = vmatpush1.bf16.msra.mxu0 %v1616
        %1773 = vmatprep.subr.bf16.mxu0 0
        %1774 = vmatpush1.bf16.msra.mxu0 %v1617
        %1775 = vmatprep.subr.bf16.mxu0 0
        %1776 = vmatpush1.bf16.msra.mxu0 %v1618
        %1777 = vmatprep.subr.bf16.mxu0 0
        %1778 = vmatpush1.bf16.msra.mxu0 %v1619
        %1779 = vmatprep.subr.bf16.mxu0 0
        %1780 = vmatpush1.bf16.msra.mxu0 %v1620
        %1781 = vmatprep.subr.bf16.mxu0 0
        %1782 = vmatpush1.bf16.msra.mxu0 %v1621
        %1783 = vmatprep.subr.bf16.mxu0 0
        %1784 = vmatpush1.bf16.msra.mxu0 %v1622
        %1785 = vmatprep.subr.bf16.mxu0 0
        %1786 = vmatpush1.bf16.msra.mxu0 %v1623
        %1787 = vmatprep.subr.bf16.mxu0 0
        %1788 = vmatpush1.bf16.msra.mxu0 %v1624
        %1789 = vmatprep.subr.bf16.mxu0 0
        %1790 = vmatpush1.bf16.msra.mxu0 %v1625
        %1791 = vmatprep.subr.bf16.mxu0 0
        %1792 = vmatpush1.bf16.msra.mxu0 %v1626
        %1793 = vmatprep.subr.bf16.mxu0 0
        %1794 = vmatpush1.bf16.msra.mxu0 %v1627
        %1795 = vmatprep.subr.bf16.mxu0 0
        %1796 = vmatpush1.bf16.msra.mxu0 %v1628
        %1797 = vmatprep.mubr.bf16.mxu0 %v1208
        %1798 = vmatmul.mubr.bf16.gmra.mrb[0].mxu0 %v1207
        %v1799 = vpop.f32.mrb[0].mxu0
        %v1800 = vadd.f32 %v1760, %v1799
        %v1801 = vpop.f32.mrb[0].mxu0
        %v1802 = vpop.f32.mrb[0].mxu0
        %v1803 = vpop.f32.mrb[0].mxu0
        %1804 = vdwg.mxu0
        %1805 = vmatprep.subr.bf16.mxu0 0
        %1806 = vmatpush1.bf16.msra.mxu0 %v1629
        %1807 = vmatprep.subr.bf16.mxu0 0
        %1808 = vmatpush1.bf16.msra.mxu0 %v1630
        %1809 = vmatprep.subr.bf16.mxu0 0
        %1810 = vmatpush1.bf16.msra.mxu0 %v1631
        %1811 = vmatprep.subr.bf16.mxu0 0
        %1812 = vmatpush1.bf16.msra.mxu0 %v1632
        %1813 = vmatprep.subr.bf16.mxu0 0
        %1814 = vmatpush1.bf16.msra.mxu0 %v1633
        %1815 = vmatprep.subr.bf16.mxu0 0
        %1816 = vmatpush1.bf16.msra.mxu0 %v1634
        %1817 = vmatprep.subr.bf16.mxu0 0
        %1818 = vmatpush1.bf16.msra.mxu0 %v1635
        %1819 = vmatprep.subr.bf16.mxu0 0
        %1820 = vmatpush1.bf16.msra.mxu0 %v1636
        %1821 = vmatprep.subr.bf16.mxu0 0
        %1822 = vmatpush1.bf16.msra.mxu0 %v1637
        %1823 = vmatprep.subr.bf16.mxu0 0
        %1824 = vmatpush1.bf16.msra.mxu0 %v1638
        %1825 = vmatprep.subr.bf16.mxu0 0
        %1826 = vmatpush1.bf16.msra.mxu0 %v1639
        %1827 = vmatprep.subr.bf16.mxu0 0
        %1828 = vmatpush1.bf16.msra.mxu0 %v1640
        %1829 = vmatprep.subr.bf16.mxu0 0
        %1830 = vmatpush1.bf16.msra.mxu0 %v1641
        %1831 = vmatprep.subr.bf16.mxu0 0
        %1832 = vmatpush1.bf16.msra.mxu0 %v1642
        %1833 = vmatprep.subr.bf16.mxu0 0
        %1834 = vmatpush1.bf16.msra.mxu0 %v1643
        %1835 = vmatprep.subr.bf16.mxu0 0
        %1836 = vmatpush1.bf16.msra.mxu0 %v1644
        %1837 = vmatprep.mubr.bf16.mxu0 %v1210
        %1838 = vmatmul.mubr.bf16.gmra.mrb[0].mxu0 %v1209
        %v1839 = vpop.f32.mrb[0].mxu0
        %v1840 = vadd.f32 %v1800, %v1839
        %v1841 = vpop.f32.mrb[0].mxu0
        %v1842 = vpop.f32.mrb[0].mxu0
        %v1843 = vpop.f32.mrb[0].mxu0
        %1844 = vdwg.mxu0
        %1845 = vmatprep.subr.bf16.mxu0 0
        %1846 = vmatpush1.bf16.msra.mxu0 %v1645
        %1847 = vmatprep.subr.bf16.mxu0 0
        %1848 = vmatpush1.bf16.msra.mxu0 %v1646
        %1849 = vmatprep.subr.bf16.mxu0 0
        %1850 = vmatpush1.bf16.msra.mxu0 %v1647
        %1851 = vmatprep.subr.bf16.mxu0 0
        %1852 = vmatpush1.bf16.msra.mxu0 %v1648
        %1853 = vmatprep.subr.bf16.mxu0 0
        %1854 = vmatpush1.bf16.msra.mxu0 %v1649
        %1855 = vmatprep.subr.bf16.mxu0 0
        %1856 = vmatpush1.bf16.msra.mxu0 %v1650
        %1857 = vmatprep.subr.bf16.mxu0 0
        %1858 = vmatpush1.bf16.msra.mxu0 %v1651
        %1859 = vmatprep.subr.bf16.mxu0 0
        %1860 = vmatpush1.bf16.msra.mxu0 %v1652
        %1861 = vmatprep.subr.bf16.mxu0 0
        %1862 = vmatpush1.bf16.msra.mxu0 %v1653
        %1863 = vmatprep.subr.bf16.mxu0 0
        %1864 = vmatpush1.bf16.msra.mxu0 %v1654
        %1865 = vmatprep.subr.bf16.mxu0 0
        %1866 = vmatpush1.bf16.msra.mxu0 %v1655
        %1867 = vmatprep.subr.bf16.mxu0 0
        %1868 = vmatpush1.bf16.msra.mxu0 %v1656
        %1869 = vmatprep.subr.bf16.mxu0 0
        %1870 = vmatpush1.bf16.msra.mxu0 %v1657
        %1871 = vmatprep.subr.bf16.mxu0 0
        %1872 = vmatpush1.bf16.msra.mxu0 %v1658
        %1873 = vmatprep.subr.bf16.mxu0 0
        %1874 = vmatpush1.bf16.msra.mxu0 %v1659
        %1875 = vmatprep.subr.bf16.mxu0 0
        %1876 = vmatpush1.bf16.msra.mxu0 %v1660
        %1877 = vmatprep.mubr.bf16.mxu0 %v1212
        %1878 = vmatmul.mubr.bf16.gmra.mrb[0].mxu0 %v1211
        %v1879 = vpop.f32.mrb[0].mxu0
        %v1880 = vadd.f32 %v1840, %v1879
        %v1881 = vpop.f32.mrb[0].mxu0
        %v1882 = vpop.f32.mrb[0].mxu0
        %v1883 = vpop.f32.mrb[0].mxu0
        %1884 = vdwg.mxu0
        %v1885 = vtanh.pop %v1880
        %v1886 = vpack.c.bf16 %v1885, %v1885
        %v1887 = vld [vmem:[%s4] sm:$0xf]
        %v1888 = vld [vmem:[%s4 + $0x4] sm:$0xf]
        %v1891 = vunpack.c.l.b16 %v1887
        %v1892 = vunpack.c.l.b16 %v1888
        %v1893 = vpack.c.b16 %v1892, %v1891
        %vm1895 = vcmask 130048
        %v1897 = vsel %vm1895, %v1886, 0
        %1899 = vmatprep.subr.bf16.mxu0 0
        %1900 = vmatpush1.bf16.msra.mxu0 %v1893
        %1901 = vmatprep.subr.bf16.mxu0 0
        %1902 = vmatpush1.bf16.msra.mxu0 0
        %1903 = vmatprep.subr.bf16.mxu0 0
        %1904 = vmatpush1.bf16.msra.mxu0 0
        %1905 = vmatprep.subr.bf16.mxu0 0
        %1906 = vmatpush1.bf16.msra.mxu0 0
        %1907 = vmatprep.subr.bf16.mxu0 0
        %1908 = vmatpush1.bf16.msra.mxu0 0
        %1909 = vmatprep.subr.bf16.mxu0 0
        %1910 = vmatpush1.bf16.msra.mxu0 0
        %1911 = vmatprep.subr.bf16.mxu0 0
        %1912 = vmatpush1.bf16.msra.mxu0 0
        %1913 = vmatprep.subr.bf16.mxu0 0
        %1914 = vmatpush1.bf16.msra.mxu0 0
        %1915 = vmatprep.subr.bf16.mxu0 0
        %1916 = vmatpush1.bf16.msra.mxu0 0
        %1917 = vmatprep.subr.bf16.mxu0 0
        %1918 = vmatpush1.bf16.msra.mxu0 0
        %1919 = vmatprep.subr.bf16.mxu0 0
        %1920 = vmatpush1.bf16.msra.mxu0 0
        %1921 = vmatprep.subr.bf16.mxu0 0
        %1922 = vmatpush1.bf16.msra.mxu0 0
        %1923 = vmatprep.subr.bf16.mxu0 0
        %1924 = vmatpush1.bf16.msra.mxu0 0
        %1925 = vmatprep.subr.bf16.mxu0 0
        %1926 = vmatpush1.bf16.msra.mxu0 0
        %1927 = vmatprep.subr.bf16.mxu0 0
        %1928 = vmatpush1.bf16.msra.mxu0 0
        %1929 = vmatprep.subr.bf16.mxu0 0
        %1930 = vmatpush1.bf16.msra.mxu0 0
        %1931 = vmatprep.mubr.bf16.mxu0 0
        %1932 = vmatmul.mubr.bf16.gmra.mrb[0].mxu0 %v1897
        %v1933 = vpop.f32.mrb[0].mxu0
        %v1934 = vadd.f32 0.0, %v1933
        %v1935 = vpop.f32.mrb[0].mxu0
        %v1936 = vpop.f32.mrb[0].mxu0
        %v1937 = vpop.f32.mrb[0].mxu0
        %1938 = vdwg.mxu0
        %1940 = vrot.lane.b32.xlu0 %v1934, 16
        %v1941 = vpop.permute.xlu0 %1940
        %v1943 = vmul.f32 %v1880, %v1941
        %1945 = vrot.lane.b32.xlu0 %v1943, 120
        %v1946 = vpop.permute.xlu0 %1945
        %vm1948 = vcmask 64512
        %v1949 = vsel %vm1948, %v1885, %v1946
        %v1950 = vpack.c.bf16 %v1949, %v1949
        %v1951 = vld [vmem:[%s5] sm:$0xf]
        %v1952 = vld [vmem:[%s5 + $0x4] sm:$0xf]
        %v1953 = vld [vmem:[%s5 + $0x8] sm:$0xf]
        %v1954 = vld [vmem:[%s5 + $0xc] sm:$0xf]
        %v1959 = vunpack.c.l.b16 %v1951
        %v1960 = vunpack.c.l.b16 %v1952
        %v1961 = vunpack.c.l.b16 %v1953
        %v1962 = vunpack.c.l.b16 %v1954
        %v1963 = vpack.c.b16 %v1960, %v1959
        %v1964 = vpack.c.b16 %v1962, %v1961
        %v1968 = vsel %vm266, %v1950, 0
        %1970 = vmatprep.subr.bf16.mxu0 0
        %1971 = vmatpush1.bf16.msra.mxu0 %v1963
        %1972 = vmatprep.subr.bf16.mxu0 0
        %1973 = vmatpush1.bf16.msra.mxu0 %v1964
        %1974 = vmatprep.subr.bf16.mxu0 0
        %1975 = vmatpush1.bf16.msra.mxu0 0
        %1976 = vmatprep.subr.bf16.mxu0 0
        %1977 = vmatpush1.bf16.msra.mxu0 0
        %1978 = vmatprep.subr.bf16.mxu0 0
        %1979 = vmatpush1.bf16.msra.mxu0 0
        %1980 = vmatprep.subr.bf16.mxu0 0
        %1981 = vmatpush1.bf16.msra.mxu0 0
        %1982 = vmatprep.subr.bf16.mxu0 0
        %1983 = vmatpush1.bf16.msra.mxu0 0
        %1984 = vmatprep.subr.bf16.mxu0 0
        %1985 = vmatpush1.bf16.msra.mxu0 0
        %1986 = vmatprep.subr.bf16.mxu0 0
        %1987 = vmatpush1.bf16.msra.mxu0 0
        %1988 = vmatprep.subr.bf16.mxu0 0
        %1989 = vmatpush1.bf16.msra.mxu0 0
        %1990 = vmatprep.subr.bf16.mxu0 0
        %1991 = vmatpush1.bf16.msra.mxu0 0
        %1992 = vmatprep.subr.bf16.mxu0 0
        %1993 = vmatpush1.bf16.msra.mxu0 0
        %1994 = vmatprep.subr.bf16.mxu0 0
        %1995 = vmatpush1.bf16.msra.mxu0 0
        %1996 = vmatprep.subr.bf16.mxu0 0
        %1997 = vmatpush1.bf16.msra.mxu0 0
        %1998 = vmatprep.subr.bf16.mxu0 0
        %1999 = vmatpush1.bf16.msra.mxu0 0
        %2000 = vmatprep.subr.bf16.mxu0 0
        %2001 = vmatpush1.bf16.msra.mxu0 0
        %2002 = vmatprep.mubr.bf16.mxu0 0
        %2003 = vmatmul.mubr.bf16.gmra.mrb[0].mxu0 %v1968
        %v2004 = vpop.f32.mrb[0].mxu0
        %v2005 = vadd.f32 0.0, %v2004
        %v2006 = vpop.f32.mrb[0].mxu0
        %v2007 = vpop.f32.mrb[0].mxu0
        %v2008 = vpop.f32.mrb[0].mxu0
        %2009 = vdwg.mxu0
        %2010 = vst.msk [vmem:[%s242] sm:$0xff] %vm266, %v2005
        %s2011 = sand.u32 %s159, 1
        %s2012 = scalar_lea.sflag [#allocation3], %s2011
        %s2013 = sand.u32 %s159, 1
        %s2014 = smul.addr %s2013, 8
        %s2015 = scalar_lea.vmem [#allocation2], %s2014
        // Predicated region
        $region45: #{tensor_product_block.1} parent=43 // pred_check
          %p2016 = pneg %p169
        $region46: #{tensor_product_block.1} parent=43 // pred_check_branch
          %2018 = sbr.rel (%p2016) target = $region48
        $region47: #{tensor_product_block.1} parent=43 // pred_region
          %s2020 = ssub.s32 128, 128
          %2021 = vsyncadd %s2012, %s2020
          %s2022 = smul.addr %s20, 128
          %s2023 = scalar_lea.hbm %s6, %s2022
          %s2025 = sshll.u32 %s2015, 4
          %s2026 = int_to_ptr.vmem [resolvable:$true] %s2025
          %2028 = dma.vmem_to_hbm [thread:$0]  %s2026, 128, %s2023, %s2012
        $region48: #{tensor_product_block.1} parent=43 // pred_fallthru
          _
      $region44: #{tensor_product_block.1} parent=5 // pred_fallthru
        _
      %p2029 = scmp.le.s32.totalorder 2, %s15
      // Predicated region
      $region49: #{tensor_product_block.1} parent=5 // pred_check
        %p2030 = pneg %p2029
      $region50: #{tensor_product_block.1} parent=5 // pred_check_branch
        %2032 = sbr.rel (%p2030) target = $region52
      $region51: #{tensor_product_block.1} parent=5 // pred_region
        %s2033 = ssub.s32 %s15, 2
        // Predicated region
        $region53: #{tensor_product_block.1} parent=51 // pred_check
          %p2034 = pneg %p175
        $region54: #{tensor_product_block.1} parent=51 // pred_check_branch
          %2036 = sbr.rel (%p2034) target = $region56
        $region55: #{tensor_product_block.1} parent=51 // pred_region
          %s2037 = sand.u32 %s160, 1
          %s2038 = scalar_lea.sflag [#allocation3], %s2037
          %s2039 = sand.u32 %s160, 1
          %s2040 = smul.addr %s2039, 8
          %s2041 = scalar_lea.vmem [#allocation2], %s2040
          %2042 = dma.done %s2038, 128
        $region56: #{tensor_product_block.1} parent=51 // pred_fallthru
          _
      $region52: #{tensor_product_block.1} parent=5 // pred_fallthru
        _
    $region6: #{tensor_product_block.1} parent=1 // loop_footer
      %s19 = sadd.s32 1, %s15
    $region7: #{tensor_product_block.1} parent=1 // loop_footer_branch
      %14 = sbr.rel target = $region3
    $region8: #{tensor_product_block.1} parent=1 // loop_exit
      _
    %2043 = vsyncpa [#allocation3], 1
    %s2044 = scalar_lea.sflag [#allocation3], 1
    %2045 = vsyncpa %s2044, 1

</llo_original>
